<compile_context>
chip_gen: v7x
topology: tpu7x:2x2x1
jax: 0.10.0
libtpu: 0.0.40
codegen_flags: <defaults>
</compile_context>

<pallas_src>
from functools import partial

import numpy as np
import jax
import jax.numpy as jnp
from jax.experimental import pallas as pl
from jax.experimental.pallas import tpu as pltpu


# ----------------------------------------------------------------------------
# Host-side separable interpolation matrices.
# ----------------------------------------------------------------------------

def _nearest_matrix(in_size, out_size):
    # PyTorch mode='nearest' (NOT 'nearest-exact'): src = floor(dst * in / out).
    dst = np.arange(out_size)
    src = (dst * in_size) // out_size
    m = np.zeros((out_size, in_size), dtype=np.float32)
    m[dst, src] = 1.0
    return m


def _linear_matrix(in_size, out_size, align_corners):
    dst = np.arange(out_size, dtype=np.float64)
    if align_corners and out_size > 1:
        src = dst * (in_size - 1) / max(out_size - 1, 1)
    else:
        src = (dst + 0.5) * in_size / out_size - 0.5
    src = np.clip(src, 0.0, in_size - 1)
    lo = np.floor(src).astype(np.int64)
    hi = np.minimum(lo + 1, in_size - 1)
    w_hi = src - lo
    w_lo = 1.0 - w_hi
    m = np.zeros((out_size, in_size), dtype=np.float32)
    np.add.at(m, (np.arange(out_size), lo), w_lo)
    np.add.at(m, (np.arange(out_size), hi), w_hi)
    return m


# ----------------------------------------------------------------------------
# Hardware-aware sizing helpers.
# ----------------------------------------------------------------------------

def _device_kind():
    try:
        return jax.devices()[0].device_kind.lower()
    except Exception:
        return ""


def _tpu_vmem_physical_bytes():
    try:
        return int(pltpu.get_tpu_info().vmem_capacity_bytes)
    except Exception:
        pass
    if "v7" in _device_kind():
        return 64 * 1024 * 1024
    return 128 * 1024 * 1024


def _vmem_budget_bytes():
    # Scoped-VMEM budget we are willing to claim (headroom for Mosaic internal
    # scratch): ~48 MiB on v7x (64 MiB physical), 96 MiB on v5e/v6e (128 MiB).
    return min((_tpu_vmem_physical_bytes() * 3) // 4, 96 * 1024 * 1024)


def _chip_peaks():
    # (peak bf16 matmul FLOP/s, ~peak f32 matmul FLOP/s, HBM bytes/s).
    kind = _device_kind()
    if "v5 lite" in kind or "v5e" in kind or "v5lite" in kind:
        return 197e12, 49e12, 0.82e12
    if "v7" in kind:
        return 996e12, 249e12, 3.2e12
    # v6e / unknown: assume v6e-class.
    return 918e12, 229e12, 1.35e12


def _pick_block_rows(nc, row_bytes, *, sublane_align, target_bytes):
    """# of (n*c) slices per grid step: ~target_bytes per block, >=2 roughly
    balanced grid steps whenever possible (v7x has 2 TensorCores)."""
    b = max(1, int(target_bytes) // max(int(row_bytes), 1))
    b = min(b, nc)
    if nc > 1:
        nsteps = max(2, pl.cdiv(nc, b))
        b = pl.cdiv(nc, nsteps)
    if sublane_align and b < nc:
        # 2D blocks: sublane dim must be a multiple of 8 (or the full extent).
        # For tiny nc (< 16) this may force a single step; that is the HW
        # alignment constraint, not a sizing bug.
        b = min(nc, max(8, ((b + 7) // 8) * 8))
    return max(1, min(b, nc))


# ----------------------------------------------------------------------------
# Kernels.
# ----------------------------------------------------------------------------

def _kron_kernel(x_ref, k_ref, o_ref, *, round_output):
    # x_ref: (B, H_in*W_in)            lane-dense input rows (one per (n,c))
    # k_ref: (H_in*W_in, H_out*W_out)  fused kron(A, B).T interpolation weights
    # o_ref: (B, H_out*W_out)          lane-dense output rows
    cdt = (jnp.bfloat16
           if (x_ref.dtype == jnp.bfloat16 and k_ref.dtype == jnp.bfloat16)
           else jnp.float32)
    y = jnp.dot(x_ref[...].astype(cdt), k_ref[...].astype(cdt),
                preferred_element_type=jnp.float32)
    if round_output:
        info = jnp.iinfo(o_ref.dtype)
        y = jnp.clip(jnp.round(y), info.min, info.max)
    o_ref[...] = y.astype(o_ref.dtype)


def _separable_kernel(x_ref, a_ref, bt_ref, o_ref, *, round_output):
    # x_ref : (B, H_in, W_in)   a_ref: (H_out, H_in)   bt_ref: (W_in, W_out)
    # o_ref : (B, H_out, W_out)
    b, h_in, w_in = x_ref.shape
    w_out = bt_ref.shape[1]
    cdt = (jnp.bfloat16
           if (x_ref.dtype == jnp.bfloat16 and a_ref.dtype == jnp.bfloat16)
           else jnp.float32)
    a = a_ref[...].astype(cdt)
    bt = bt_ref[...].astype(cdt)
    x = x_ref[...].astype(cdt)

    if h_in % 8 == 0:
        # One batched width matmul (M = B*H_in rows) fills the MXU instead of
        # B under-filled (H_in, W_in) matmuls.
        t = jnp.dot(x.reshape(b * h_in, w_in), bt,
                    preferred_element_type=jnp.float32)
        t = t.reshape(b, h_in, w_out).astype(cdt)
    else:
        t = None  # odd H_in: per-slice width matmul inside the loop

    def body(i, carry):
        if t is not None:
            ti = t[i]
        else:
            ti = jnp.dot(x[i], bt,
                         preferred_element_type=jnp.float32).astype(cdt)
        y = jnp.dot(a, ti, preferred_element_type=jnp.float32)
        if round_output:
            info = jnp.iinfo(o_ref.dtype)
            y = jnp.clip(jnp.round(y), info.min, info.max)
        o_ref[i] = y.astype(o_ref.dtype)
        return carry

    # Unrolled so the scheduler can interleave loads / MXU pushes / stores
    # across slices (rolled per-slice loops cost ~35%).
    jax.lax.fori_loop(0, b, body, 0, unroll=True)


# ----------------------------------------------------------------------------
# pallas_call wrappers.
# ----------------------------------------------------------------------------

def _upsample_kron(x2, kt, round_output, budget):
    nc, in_feat = x2.shape
    out_feat = kt.shape[1]
    itemsize = np.dtype(x2.dtype).itemsize
    kron_bytes = int(kt.size) * np.dtype(kt.dtype).itemsize
    target = min(8 << 20, max(1 << 20, (budget - kron_bytes) // 5))
    blk = _pick_block_rows(nc, (in_feat + out_feat) * itemsize,
                           sublane_align=True, target_bytes=target)
    grid = (pl.cdiv(nc, blk),)
    cost = pl.CostEstimate(
        flops=2 * nc * in_feat * out_feat,
        transcendentals=0,
        bytes_accessed=nc * (in_feat + out_feat) * itemsize + kron_bytes,
    )
    params = pltpu.CompilerParams(
        dimension_semantics=("parallel",), vmem_limit_bytes=int(budget))

    def build(single_buffer_weight):
        wkw = {"pipeline_mode": pl.Buffered(1)} if single_buffer_weight else {}
        return pl.pallas_call(
            partial(_kron_kernel, round_output=round_output),
            out_shape=jax.ShapeDtypeStruct((nc, out_feat), x2.dtype),
            grid=grid,
            in_specs=[
                pl.BlockSpec((blk, in_feat), lambda i: (i, 0)),
                # Constant-index weight: fetched once; single-buffering saves
                # kron_bytes of VMEM vs. the default double buffering.
                pl.BlockSpec((in_feat, out_feat), lambda i: (0, 0), **wkw),
            ],
            out_specs=pl.BlockSpec((blk, out_feat), lambda i: (i, 0)),
            compiler_params=params,
            cost_estimate=cost,
        )

    try:
        return build(True)(x2, kt)
    except Exception:
        # Fallback if this JAX build rejects pl.Buffered(1) on this spec.
        return build(False)(x2, kt)


def _upsample_separable(x3, a, bt, round_output, budget):
    nc, h_in, w_in = x3.shape
    h_out, w_out = a.shape[0], bt.shape[1]
    itemsize = np.dtype(x3.dtype).itemsize
    wbytes = np.dtype(a.dtype).itemsize
    # in block + out block + f32 intermediate, per (n,c) slice
    row_bytes = (h_in * w_in + h_out * w_out) * itemsize + h_in * w_out * 4
    target = min(6 << 20, max(1 << 20, budget // 6))
    blk = _pick_block_rows(nc, row_bytes, sublane_align=False, target_bytes=target)
    blk = min(blk, 64)              # keep the unrolled per-slice loop bounded
    grid = (pl.cdiv(nc, blk),)
    flops = 2 * nc * (h_in * w_in * w_out + h_out * h_in * w_out)
    cost = pl.CostEstimate(
        flops=flops, transcendentals=0,
        bytes_accessed=nc * (h_in * w_in + h_out * w_out) * itemsize
        + (int(a.size) + int(bt.size)) * wbytes,
    )
    params = pltpu.CompilerParams(
        dimension_semantics=("parallel",), vmem_limit_bytes=int(budget))
    # TODO(synk): extremely large single-slice outputs (tens of MB) would also
    # need spatial tiling of the output block to stay inside VMEM.

    def build(single_buffer_weights):
        wkw = {"pipeline_mode": pl.Buffered(1)} if single_buffer_weights else {}
        return pl.pallas_call(
            partial(_separable_kernel, round_output=round_output),
            out_shape=jax.ShapeDtypeStruct((nc, h_out, w_out), x3.dtype),
            grid=grid,
            in_specs=[
                pl.BlockSpec((blk, h_in, w_in), lambda i: (i, 0, 0)),
                pl.BlockSpec((h_out, h_in), lambda i: (0, 0), **wkw),
                pl.BlockSpec((w_in, w_out), lambda i: (0, 0), **wkw),
            ],
            # TODO(synk): present the output lane-dense as (blk, H_out*W_out) once
            # the in-kernel (H_out, W_out) flatten is verified to lower cleanly.
            out_specs=pl.BlockSpec((blk, h_out, w_out), lambda i: (i, 0, 0)),
            compiler_params=params,
            cost_estimate=cost,
        )

    try:
        return build(True)(x3, a, bt)
    except Exception:
        return build(False)(x3, a, bt)


# ----------------------------------------------------------------------------
# Public entry point (forward of the PyTorch Upsample module).
# ----------------------------------------------------------------------------

def upsample(x, size=None, scale_factor=None, mode="nearest", align_corners=False):
    n, c, h_in, w_in = x.shape
    if size is not None:
        h_out, w_out = ((int(size), int(size)) if isinstance(size, int)
                        else (int(size[0]), int(size[1])))
    else:
        if scale_factor is None:
            raise ValueError("either size or scale_factor must be specified")
        sf = scale_factor
        sh, sw = (sf, sf) if not isinstance(sf, (tuple, list)) else (sf[0], sf[1])
        h_out, w_out = int(np.floor(h_in * sh)), int(np.floor(w_in * sw))

    if mode == "nearest":
        a = _nearest_matrix(h_in, h_out)
        bm = _nearest_matrix(w_in, w_out)
        wdtype = jnp.bfloat16      # 0/1 weights are exact in bf16: half the traffic
    elif mode == "bilinear":
        a = _linear_matrix(h_in, h_out, align_corners)
        bm = _linear_matrix(w_in, w_out, align_corners)
        wdtype = jnp.float32       # 2-tap rows must sum to exactly 1 -> keep f32
    else:
        # TODO(synk): bicubic / area / trilinear modes not implemented (unused by this FPN).
        raise NotImplementedError(mode)

    round_output = bool(jnp.issubdtype(x.dtype, jnp.integer))
    compute_bf16 = (x.dtype == jnp.bfloat16) and (wdtype == jnp.bfloat16)

    nc = n * c
    in_feat, out_feat = h_in * w_in, h_out * w_out
    itemsize = np.dtype(x.dtype).itemsize
    budget = _vmem_budget_bytes()

    kron_bytes = in_feat * out_feat * np.dtype(wdtype).itemsize
    weight_limit = min(8 << 20, budget // 3)
    # Arithmetic-intensity gate: keep the fused one-hot/2-tap matmul below the
    # chip's MXU/HBM roofline so the kernel stays HBM-bound (biggest effect on
    # v5e and for f32 inputs, where the MXU is weakest).
    bf16_peak, f32_peak, hbm_bw = _chip_peaks()
    peak = bf16_peak if compute_bf16 else f32_peak
    intensity = 2.0 * in_feat * out_feat / ((in_feat + out_feat) * itemsize)
    hbm_bound = intensity <= (peak / hbm_bw)
    fits = (kron_bytes <= weight_limit
            and kron_bytes + 16 * (in_feat + out_feat) * itemsize <= (budget * 4) // 5)

    # TODO(synk): integer-scale 'nearest' could bypass the MXU entirely with an
    # in-kernel repeat; the one-hot matmul below is already roofline-gated.
    if fits and hbm_bound:
        # Fully fused, lane-dense path: one matmul per block of (n*c) slices.
        kt = jnp.asarray(np.kron(a, bm).T, dtype=wdtype)   # (H_in*W_in, H_out*W_out)
        out = _upsample_kron(x.reshape(nc, in_feat), kt, round_output, budget)
    else:
        # Separable fallback: out = A @ (x @ B^T) per slice, batched per grid step.
        out = _upsample_separable(
            x.reshape(nc, h_in, w_in),
            jnp.asarray(a, dtype=wdtype),
            jnp.asarray(bm.T, dtype=wdtype),
            round_output, budget)

    return out.reshape(n, c, h_out, w_out)


# ----------------------------------------------------------------------------
# Self-test.
# ----------------------------------------------------------------------------

if __name__ == "__main__":
    key = jax.random.PRNGKey(0)
    k1, k2, k3 = jax.random.split(key, 3)
    x = jax.random.normal(k1, (2, 4, 16, 16), dtype=jnp.float32)

    # --- mode='nearest' (module default), scale_factor=2 ---
    y = jax.block_until_ready(upsample(x, scale_factor=2, mode="nearest"))
    assert y.shape == (2, 4, 32, 32), y.shape
    ref = jnp.repeat(jnp.repeat(x, 2, axis=2), 2, axis=3)   # exact for integer-scale nearest
    np.testing.assert_allclose(np.asarray(y), np.asarray(ref), atol=1e-6)

    # --- nearest on bf16 input (bf16 weights, bf16 MXU path; still exact) ---
    xb = x.astype(jnp.bfloat16)
    yb = jax.block_until_ready(upsample(xb, scale_factor=2, mode="nearest"))
    refb = jnp.repeat(jnp.repeat(xb, 2, axis=2), 2, axis=3)
    np.testing.assert_allclose(np.asarray(yb.astype(jnp.float32)),
                               np.asarray(refb.astype(jnp.float32)), atol=0.0)

    # --- bilinear, align_corners=False, non-square arbitrary size ---
    y2 = jax.block_until_ready(upsample(x, size=(24, 20), mode="bilinear", align_corners=False))
    assert y2.shape == (2, 4, 24, 20), y2.shape
    a_np = _linear_matrix(16, 24, False)
    b_np = _linear_matrix(16, 20, False)
    ref2 = np.einsum("ih,jw,nchw->ncij", a_np, b_np, np.asarray(x, dtype=np.float64))
    np.testing.assert_allclose(np.asarray(y2), ref2, rtol=1e-4, atol=1e-4)

    # --- bilinear, align_corners=True ---
    y3 = jax.block_until_ready(upsample(x, scale_factor=2, mode="bilinear", align_corners=True))
    assert y3.shape == (2, 4, 32, 32), y3.shape
    a_np = _linear_matrix(16, 32, True)
    b_np = _linear_matrix(16, 32, True)
    ref3 = np.einsum("ih,jw,nchw->ncij", a_np, b_np, np.asarray(x, dtype=np.float64))
    np.testing.assert_allclose(np.asarray(y3), ref3, rtol=1e-4, atol=1e-4)

    # --- ragged N*C (grid block does not divide N*C) ---
    x5 = jax.random.normal(k2, (2, 5, 16, 16), dtype=jnp.float32)
    y5 = jax.block_until_ready(upsample(x5, scale_factor=2, mode="nearest"))
    ref5 = jnp.repeat(jnp.repeat(x5, 2, axis=2), 2, axis=3)
    np.testing.assert_allclose(np.asarray(y5), np.asarray(ref5), atol=1e-6)

    # --- separable fallback path (kron weight too large) ---
    x48 = jax.random.normal(k3, (2, 4, 48, 48), dtype=jnp.float32)
    y48 = jax.block_until_ready(upsample(x48, scale_factor=2, mode="nearest"))
    assert y48.shape == (2, 4, 96, 96), y48.shape
    ref48 = jnp.repeat(jnp.repeat(x48, 2, axis=2), 2, axis=3)
    np.testing.assert_allclose(np.asarray(y48), np.asarray(ref48), atol=1e-6)

    print("KERNEL_OK")
</pallas_src>

<mosaic_0001>
module attributes {stable_mosaic.version = 11 : i64} {
  func.func @_kron_kernel(%arg0: i32, %arg1: memref<8x256xf32, #tpu.memory_space<vmem>>, %arg2: memref<256x1024xbf16, #tpu.memory_space<vmem>>, %arg3: memref<8x1024xf32, #tpu.memory_space<vmem>>) attributes {dimension_semantics = [#tpu.dimension_semantics<parallel>], iteration_bounds = array<i64: 1>, scalar_prefetch = 0 : i64, scratch_operands = 0 : i64, tpu.core_type = #tpu.core_type<tc>, window_params = [{transform_indices = @transform_0, window_bounds = array<i64: 8, 256>}, {pipeline_mode = #tpu.pipeline_mode<synchronous>, transform_indices = @transform_1, window_bounds = array<i64: 256, 1024>}, {transform_indices = @transform_2, window_bounds = array<i64: 8, 1024>}]} {
    %c0 = arith.constant 0 : index
    %c0_0 = arith.constant 0 : index
    %0 = vector.load %arg1[%c0, %c0_0] : memref<8x256xf32, #tpu.memory_space<vmem>>, vector<8x256xf32>
    %c0_1 = arith.constant 0 : index
    %c0_2 = arith.constant 0 : index
    %1 = vector.load %arg2[%c0_1, %c0_2] : memref<256x1024xbf16, #tpu.memory_space<vmem>>, vector<256x1024xbf16>
    %2 = arith.extf %1 : vector<256x1024xbf16> to vector<256x1024xf32>
    %cst = arith.constant dense<0.000000e+00> : vector<8x1024xf32>
    %3 = tpu.matmul %0, %2, %cst {dimension_numbers = #tpu.dot_dimension_numbers<[1], [0], [0], [1], [0, 0, 1, 1], [], []>} : vector<8x256xf32>, vector<256x1024xf32>, vector<8x1024xf32> -> vector<8x1024xf32>
    %c0_3 = arith.constant 0 : index
    %c0_4 = arith.constant 0 : index
    %4 = vector.load %arg3[%c0_3, %c0_4] : memref<8x1024xf32, #tpu.memory_space<vmem>>, vector<8x1024xf32>
    tpu.vector_store %arg3[%c0_3, %c0_4], %3 {strides = array<i32>} : memref<8x1024xf32, #tpu.memory_space<vmem>>, vector<8x1024xf32>,
    return
  }
  func.func @transform_0(%arg0: i32) -> (i32, i32) {
    %c0_i32 = arith.constant 0 : i32
    %c0_i32_0 = arith.constant 0 : i32
    return %arg0, %c0_i32 : i32, i32
  }
  func.func @transform_1(%arg0: i32) -> (i32, i32) {
    %c0_i32 = arith.constant 0 : i32
    %c0_i32_0 = arith.constant 0 : i32
    %c0_i32_1 = arith.constant 0 : i32
    return %c0_i32, %c0_i32_0 : i32, i32
  }
  func.func @transform_2(%arg0: i32) -> (i32, i32) {
    %c0_i32 = arith.constant 0 : i32
    %c0_i32_0 = arith.constant 0 : i32
    return %arg0, %c0_i32 : i32, i32
  }
}

module attributes {stable_mosaic.version = 11 : i64} {
  func.func @_kron_kernel(%arg0: i32, %arg1: memref<8x256xf32, #tpu.memory_space<vmem>>, %arg2: memref<256x1024xbf16, #tpu.memory_space<vmem>>, %arg3: memref<8x1024xf32, #tpu.memory_space<vmem>>) attributes {dimension_semantics = [#tpu.dimension_semantics<parallel>], iteration_bounds = array<i64: 1>, scalar_prefetch = 0 : i64, scratch_operands = 0 : i64, tpu.core_type = #tpu.core_type<tc>, window_params = [{transform_indices = @transform_0, window_bounds = array<i64: 8, 256>}, {pipeline_mode = #tpu.pipeline_mode<synchronous>, transform_indices = @transform_1, window_bounds = array<i64: 256, 1024>}, {transform_indices = @transform_2, window_bounds = array<i64: 8, 1024>}]} {
    %c0 = arith.constant 0 : index
    %c0_0 = arith.constant 0 : index
    %0 = vector.load %arg1[%c0, %c0_0] : memref<8x256xf32, #tpu.memory_space<vmem>>, vector<8x256xf32>
    %c0_1 = arith.constant 0 : index
    %c0_2 = arith.constant 0 : index
    %1 = vector.load %arg2[%c0_1, %c0_2] : memref<256x1024xbf16, #tpu.memory_space<vmem>>, vector<256x1024xbf16>
    %2 = arith.extf %1 : vector<256x1024xbf16> to vector<256x1024xf32>
    %cst = arith.constant dense<0.000000e+00> : vector<8x1024xf32>
    %3 = tpu.matmul %0, %2, %cst {dimension_numbers = #tpu.dot_dimension_numbers<[1], [0], [0], [1], [0, 0, 1, 1], [], []>} : vector<8x256xf32>, vector<256x1024xf32>, vector<8x1024xf32> -> vector<8x1024xf32>
    %c0_3 = arith.constant 0 : index
    %c0_4 = arith.constant 0 : index
    %4 = vector.load %arg3[%c0_3, %c0_4] : memref<8x1024xf32, #tpu.memory_space<vmem>>, vector<8x1024xf32>
    tpu.vector_store %arg3[%c0_3, %c0_4], %3 {strides = array<i32>} : memref<8x1024xf32, #tpu.memory_space<vmem>>, vector<8x1024xf32>,
    return
  }
  func.func @transform_0(%arg0: i32) -> (i32, i32) {
    %c0_i32 = arith.constant 0 : i32
    %c0_i32_0 = arith.constant 0 : i32
    return %arg0, %c0_i32 : i32, i32
  }
  func.func @transform_1(%arg0: i32) -> (i32, i32) {
    %c0_i32 = arith.constant 0 : i32
    %c0_i32_0 = arith.constant 0 : i32
    %c0_i32_1 = arith.constant 0 : i32
    return %c0_i32, %c0_i32_0 : i32, i32
  }
  func.func @transform_2(%arg0: i32) -> (i32, i32) {
    %c0_i32 = arith.constant 0 : i32
    %c0_i32_0 = arith.constant 0 : i32
    return %arg0, %c0_i32 : i32, i32
  }
}

</mosaic_0001>

<llo_original>
// kernel: tpu_custom_call.1
$region0: #{tpu_custom_call.1}
  #allocation0 [shape = 'u32[]', space=smem, size = 0x4, offset = 0x4, fixed_abs, tag = 'smem constant byte address 0x4 - core index']
  #allocation1 [shape = 'u32[144,128]{1,0:T(1,128)}', space=vmem, size = 0x12000, scoped, tag = 'internal scratch']
  %s0 = inlined_call_operand.hbm [shape: f32[8,256], index: 0, kind: input, shape index: {}]
  %s1 = inlined_call_operand.hbm [shape: bf16[256,1024], index: 1, kind: input, shape index: {}]
  %s2 = inlined_call_operand.hbm [shape: f32[8,1024], index: 2, kind: output, shape index: {}]
  %s3 = sld [smem:[#allocation0]]
  $region26: #{tpu_custom_call.1} parent=0
    _
  %s5 = ssub.s32 1, %s3
  %s6 = scalar_select 0, %s5, %s3
  $region1: #{tpu_custom_call.1} parent=0
    #allocation2 [shape = 'u8[8192]{0}', space=vmem, size = 0x2000, scoped, tag = 'input window, operand 0, single buffered']
    #allocation3 [shape = 's32[1]{0}', space=sflag, size = 0x4, scoped, tag = 'scoped memory for tpu_custom_call.1']
    #allocation4 [shape = 's32[1]{0}', space=sflag, size = 0x4, scoped, tag = 'scoped memory for tpu_custom_call.1']
    #allocation5 [shape = 'u8[524288]{0}', space=vmem, size = 0x80000, scoped, tag = 'input window, operand 1, single buffered']
    #allocation6 [shape = 's32[1]{0}', space=sflag, size = 0x4, scoped, tag = 'scoped memory for tpu_custom_call.1']
    #allocation7 [shape = 'u8[32768]{0}', space=vmem, size = 0x8000, scoped, tag = 'output window, operand 0, single buffered']
    %7 = vsyncpa [#allocation3], 0
    %8 = vsyncpa [#allocation6], 0
    %9 = vsyncpa [#allocation4], 0
    // Predicated region
    $region2: #{tpu_custom_call.1} parent=1 // pred_check
      _
    $region3: #{tpu_custom_call.1} parent=1 // pred_check_branch
      %11 = sbr.rel (0) target = $region5
    $region4: #{tpu_custom_call.1} parent=1 // pred_region
      %s13 = ssub.s32 256, 256
      %14 = vsyncadd [#allocation3], %s13
      %s16 = sshll.u32 [#allocation2], 4
      %s17 = int_to_ptr.vmem [resolvable:$true] %s16
      %19 = dma.hbm_to_vmem [thread:$0]  %s0, 256, %s17, [#allocation3]
    $region5: #{tpu_custom_call.1} parent=1 // pred_fallthru
      _
    // Predicated region
    $region6: #{tpu_custom_call.1} parent=1 // pred_check
      _
    $region7: #{tpu_custom_call.1} parent=1 // pred_check_branch
      %21 = sbr.rel (0) target = $region9
    $region8: #{tpu_custom_call.1} parent=1 // pred_region
      %s23 = ssub.s32 16384, 16384
      %24 = vsyncadd [#allocation6], %s23
      %s25 = sshll.u32 [#allocation5], 4
      %s26 = int_to_ptr.vmem [resolvable:$true] %s25
      %31 = dma.hbm_to_vmem [thread:$0]  %s1, 16384, %s26, [#allocation6], 512, 512, 32
    $region9: #{tpu_custom_call.1} parent=1 // pred_fallthru
      _
    // Predicated region
    $region10: #{tpu_custom_call.1} parent=1 // pred_check
      _
    $region11: #{tpu_custom_call.1} parent=1 // pred_check_branch
      %33 = sbr.rel (0) target = $region13
    $region12: #{tpu_custom_call.1} parent=1 // pred_region
      %34 = dma.done [#allocation3], 256
    $region13: #{tpu_custom_call.1} parent=1 // pred_fallthru
      _
    // Predicated region
    $region14: #{tpu_custom_call.1} parent=1 // pred_check
      _
    $region15: #{tpu_custom_call.1} parent=1 // pred_check_branch
      %36 = sbr.rel (0) target = $region17
    $region16: #{tpu_custom_call.1} parent=1 // pred_region
      %37 = dma.done [#allocation6], 16384
    $region17: #{tpu_custom_call.1} parent=1 // pred_fallthru
      _
    %v38 = vld [vmem:[#allocation2] sm:$0xff]
    %v39 = vld [vmem:[#allocation2 + $0x8] sm:$0xff]
    %v40 = vld [vmem:[#allocation5] sm:$0xff]
    %v41 = vld [vmem:[#allocation5 + $0x8] sm:$0xff]
    %v42 = vld [vmem:[#allocation5 + $0x10] sm:$0xff]
    %v43 = vld [vmem:[#allocation5 + $0x18] sm:$0xff]
    %v44 = vld [vmem:[#allocation5 + $0x20] sm:$0xff]
    %v45 = vld [vmem:[#allocation5 + $0x28] sm:$0xff]
    %v46 = vld [vmem:[#allocation5 + $0x30] sm:$0xff]
    %v47 = vld [vmem:[#allocation5 + $0x38] sm:$0xff]
    %v48 = vld [vmem:[#allocation5 + $0x40] sm:$0xff]
    %v49 = vld [vmem:[#allocation5 + $0x48] sm:$0xff]
    %v50 = vld [vmem:[#allocation5 + $0x50] sm:$0xff]
    %v51 = vld [vmem:[#allocation5 + $0x58] sm:$0xff]
    %v52 = vld [vmem:[#allocation5 + $0x60] sm:$0xff]
    %v53 = vld [vmem:[#allocation5 + $0x68] sm:$0xff]
    %v54 = vld [vmem:[#allocation5 + $0x70] sm:$0xff]
    %v55 = vld [vmem:[#allocation5 + $0x78] sm:$0xff]
    %v56 = vld [vmem:[#allocation5 + $0x80] sm:$0xff]
    %v57 = vld [vmem:[#allocation5 + $0x88] sm:$0xff]
    %v58 = vld [vmem:[#allocation5 + $0x90] sm:$0xff]
    %v59 = vld [vmem:[#allocation5 + $0x98] sm:$0xff]
    %v60 = vld [vmem:[#allocation5 + $0xa0] sm:$0xff]
    %v61 = vld [vmem:[#allocation5 + $0xa8] sm:$0xff]
    %v62 = vld [vmem:[#allocation5 + $0xb0] sm:$0xff]
    %v63 = vld [vmem:[#allocation5 + $0xb8] sm:$0xff]
    %v64 = vld [vmem:[#allocation5 + $0xc0] sm:$0xff]
    %v65 = vld [vmem:[#allocation5 + $0xc8] sm:$0xff]
    %v66 = vld [vmem:[#allocation5 + $0xd0] sm:$0xff]
    %v67 = vld [vmem:[#allocation5 + $0xd8] sm:$0xff]
    %v68 = vld [vmem:[#allocation5 + $0xe0] sm:$0xff]
    %v69 = vld [vmem:[#allocation5 + $0xe8] sm:$0xff]
    %v70 = vld [vmem:[#allocation5 + $0xf0] sm:$0xff]
    %v71 = vld [vmem:[#allocation5 + $0xf8] sm:$0xff]
    %v72 = vld [vmem:[#allocation5 + $0x100] sm:$0xff]
    %v73 = vld [vmem:[#allocation5 + $0x108] sm:$0xff]
    %v74 = vld [vmem:[#allocation5 + $0x110] sm:$0xff]
    %v75 = vld [vmem:[#allocation5 + $0x118] sm:$0xff]
    %v76 = vld [vmem:[#allocation5 + $0x120] sm:$0xff]
    %v77 = vld [vmem:[#allocation5 + $0x128] sm:$0xff]
    %v78 = vld [vmem:[#allocation5 + $0x130] sm:$0xff]
    %v79 = vld [vmem:[#allocation5 + $0x138] sm:$0xff]
    %v80 = vld [vmem:[#allocation5 + $0x140] sm:$0xff]
    %v81 = vld [vmem:[#allocation5 + $0x148] sm:$0xff]
    %v82 = vld [vmem:[#allocation5 + $0x150] sm:$0xff]
    %v83 = vld [vmem:[#allocation5 + $0x158] sm:$0xff]
    %v84 = vld [vmem:[#allocation5 + $0x160] sm:$0xff]
    %v85 = vld [vmem:[#allocation5 + $0x168] sm:$0xff]
    %v86 = vld [vmem:[#allocation5 + $0x170] sm:$0xff]
    %v87 = vld [vmem:[#allocation5 + $0x178] sm:$0xff]
    %v88 = vld [vmem:[#allocation5 + $0x180] sm:$0xff]
    %v89 = vld [vmem:[#allocation5 + $0x188] sm:$0xff]
    %v90 = vld [vmem:[#allocation5 + $0x190] sm:$0xff]
    %v91 = vld [vmem:[#allocation5 + $0x198] sm:$0xff]
    %v92 = vld [vmem:[#allocation5 + $0x1a0] sm:$0xff]
    %v93 = vld [vmem:[#allocation5 + $0x1a8] sm:$0xff]
    %v94 = vld [vmem:[#allocation5 + $0x1b0] sm:$0xff]
    %v95 = vld [vmem:[#allocation5 + $0x1b8] sm:$0xff]
    %v96 = vld [vmem:[#allocation5 + $0x1c0] sm:$0xff]
    %v97 = vld [vmem:[#allocation5 + $0x1c8] sm:$0xff]
    %v98 = vld [vmem:[#allocation5 + $0x1d0] sm:$0xff]
    %v99 = vld [vmem:[#allocation5 + $0x1d8] sm:$0xff]
    %v100 = vld [vmem:[#allocation5 + $0x1e0] sm:$0xff]
    %v101 = vld [vmem:[#allocation5 + $0x1e8] sm:$0xff]
    %v102 = vld [vmem:[#allocation5 + $0x1f0] sm:$0xff]
    %v103 = vld [vmem:[#allocation5 + $0x1f8] sm:$0xff]
    %v104 = vld [vmem:[#allocation5 + $0x200] sm:$0xff]
    %v105 = vld [vmem:[#allocation5 + $0x208] sm:$0xff]
    %v106 = vld [vmem:[#allocation5 + $0x210] sm:$0xff]
    %v107 = vld [vmem:[#allocation5 + $0x218] sm:$0xff]
    %v108 = vld [vmem:[#allocation5 + $0x220] sm:$0xff]
    %v109 = vld [vmem:[#allocation5 + $0x228] sm:$0xff]
    %v110 = vld [vmem:[#allocation5 + $0x230] sm:$0xff]
    %v111 = vld [vmem:[#allocation5 + $0x238] sm:$0xff]
    %v112 = vld [vmem:[#allocation5 + $0x240] sm:$0xff]
    %v113 = vld [vmem:[#allocation5 + $0x248] sm:$0xff]
    %v114 = vld [vmem:[#allocation5 + $0x250] sm:$0xff]
    %v115 = vld [vmem:[#allocation5 + $0x258] sm:$0xff]
    %v116 = vld [vmem:[#allocation5 + $0x260] sm:$0xff]
    %v117 = vld [vmem:[#allocation5 + $0x268] sm:$0xff]
    %v118 = vld [vmem:[#allocation5 + $0x270] sm:$0xff]
    %v119 = vld [vmem:[#allocation5 + $0x278] sm:$0xff]
    %v120 = vld [vmem:[#allocation5 + $0x280] sm:$0xff]
    %v121 = vld [vmem:[#allocation5 + $0x288] sm:$0xff]
    %v122 = vld [vmem:[#allocation5 + $0x290] sm:$0xff]
    %v123 = vld [vmem:[#allocation5 + $0x298] sm:$0xff]
    %v124 = vld [vmem:[#allocation5 + $0x2a0] sm:$0xff]
    %v125 = vld [vmem:[#allocation5 + $0x2a8] sm:$0xff]
    %v126 = vld [vmem:[#allocation5 + $0x2b0] sm:$0xff]
    %v127 = vld [vmem:[#allocation5 + $0x2b8] sm:$0xff]
    %v128 = vld [vmem:[#allocation5 + $0x2c0] sm:$0xff]
    %v129 = vld [vmem:[#allocation5 + $0x2c8] sm:$0xff]
    %v130 = vld [vmem:[#allocation5 + $0x2d0] sm:$0xff]
    %v131 = vld [vmem:[#allocation5 + $0x2d8] sm:$0xff]
    %v132 = vld [vmem:[#allocation5 + $0x2e0] sm:$0xff]
    %v133 = vld [vmem:[#allocation5 + $0x2e8] sm:$0xff]
    %v134 = vld [vmem:[#allocation5 + $0x2f0] sm:$0xff]
    %v135 = vld [vmem:[#allocation5 + $0x2f8] sm:$0xff]
    %v136 = vld [vmem:[#allocation5 + $0x300] sm:$0xff]
    %v137 = vld [vmem:[#allocation5 + $0x308] sm:$0xff]
    %v138 = vld [vmem:[#allocation5 + $0x310] sm:$0xff]
    %v139 = vld [vmem:[#allocation5 + $0x318] sm:$0xff]
    %v140 = vld [vmem:[#allocation5 + $0x320] sm:$0xff]
    %v141 = vld [vmem:[#allocation5 + $0x328] sm:$0xff]
    %v142 = vld [vmem:[#allocation5 + $0x330] sm:$0xff]
    %v143 = vld [vmem:[#allocation5 + $0x338] sm:$0xff]
    %v144 = vld [vmem:[#allocation5 + $0x340] sm:$0xff]
    %v145 = vld [vmem:[#allocation5 + $0x348] sm:$0xff]
    %v146 = vld [vmem:[#allocation5 + $0x350] sm:$0xff]
    %v147 = vld [vmem:[#allocation5 + $0x358] sm:$0xff]
    %v148 = vld [vmem:[#allocation5 + $0x360] sm:$0xff]
    %v149 = vld [vmem:[#allocation5 + $0x368] sm:$0xff]
    %v150 = vld [vmem:[#allocation5 + $0x370] sm:$0xff]
    %v151 = vld [vmem:[#allocation5 + $0x378] sm:$0xff]
    %v152 = vld [vmem:[#allocation5 + $0x380] sm:$0xff]
    %v153 = vld [vmem:[#allocation5 + $0x388] sm:$0xff]
    %v154 = vld [vmem:[#allocation5 + $0x390] sm:$0xff]
    %v155 = vld [vmem:[#allocation5 + $0x398] sm:$0xff]
    %v156 = vld [vmem:[#allocation5 + $0x3a0] sm:$0xff]
    %v157 = vld [vmem:[#allocation5 + $0x3a8] sm:$0xff]
    %v158 = vld [vmem:[#allocation5 + $0x3b0] sm:$0xff]
    %v159 = vld [vmem:[#allocation5 + $0x3b8] sm:$0xff]
    %v160 = vld [vmem:[#allocation5 + $0x3c0] sm:$0xff]
    %v161 = vld [vmem:[#allocation5 + $0x3c8] sm:$0xff]
    %v162 = vld [vmem:[#allocation5 + $0x3d0] sm:$0xff]
    %v163 = vld [vmem:[#allocation5 + $0x3d8] sm:$0xff]
    %v164 = vld [vmem:[#allocation5 + $0x3e0] sm:$0xff]
    %v165 = vld [vmem:[#allocation5 + $0x3e8] sm:$0xff]
    %v166 = vld [vmem:[#allocation5 + $0x3f0] sm:$0xff]
    %v167 = vld [vmem:[#allocation5 + $0x3f8] sm:$0xff]
    %v168 = vunpack.c.l.bf16 %v40
    %v169 = vunpack.c.h.bf16 %v40
    %v170 = vunpack.c.l.bf16 %v41
    %v171 = vunpack.c.h.bf16 %v41
    %v172 = vunpack.c.l.bf16 %v42
    %v173 = vunpack.c.h.bf16 %v42
    %v174 = vunpack.c.l.bf16 %v43
    %v175 = vunpack.c.h.bf16 %v43
    %v176 = vunpack.c.l.bf16 %v44
    %v177 = vunpack.c.h.bf16 %v44
    %v178 = vunpack.c.l.bf16 %v45
    %v179 = vunpack.c.h.bf16 %v45
    %v180 = vunpack.c.l.bf16 %v46
    %v181 = vunpack.c.h.bf16 %v46
    %v182 = vunpack.c.l.bf16 %v47
    %v183 = vunpack.c.h.bf16 %v47
    %v184 = vunpack.c.l.bf16 %v48
    %v185 = vunpack.c.h.bf16 %v48
    %v186 = vunpack.c.l.bf16 %v49
    %v187 = vunpack.c.h.bf16 %v49
    %v188 = vunpack.c.l.bf16 %v50
    %v189 = vunpack.c.h.bf16 %v50
    %v190 = vunpack.c.l.bf16 %v51
    %v191 = vunpack.c.h.bf16 %v51
    %v192 = vunpack.c.l.bf16 %v52
    %v193 = vunpack.c.h.bf16 %v52
    %v194 = vunpack.c.l.bf16 %v53
    %v195 = vunpack.c.h.bf16 %v53
    %v196 = vunpack.c.l.bf16 %v54
    %v197 = vunpack.c.h.bf16 %v54
    %v198 = vunpack.c.l.bf16 %v55
    %v199 = vunpack.c.h.bf16 %v55
    %v200 = vunpack.c.l.bf16 %v56
    %v201 = vunpack.c.h.bf16 %v56
    %v202 = vunpack.c.l.bf16 %v57
    %v203 = vunpack.c.h.bf16 %v57
    %v204 = vunpack.c.l.bf16 %v58
    %v205 = vunpack.c.h.bf16 %v58
    %v206 = vunpack.c.l.bf16 %v59
    %v207 = vunpack.c.h.bf16 %v59
    %v208 = vunpack.c.l.bf16 %v60
    %v209 = vunpack.c.h.bf16 %v60
    %v210 = vunpack.c.l.bf16 %v61
    %v211 = vunpack.c.h.bf16 %v61
    %v212 = vunpack.c.l.bf16 %v62
    %v213 = vunpack.c.h.bf16 %v62
    %v214 = vunpack.c.l.bf16 %v63
    %v215 = vunpack.c.h.bf16 %v63
    %v216 = vunpack.c.l.bf16 %v64
    %v217 = vunpack.c.h.bf16 %v64
    %v218 = vunpack.c.l.bf16 %v65
    %v219 = vunpack.c.h.bf16 %v65
    %v220 = vunpack.c.l.bf16 %v66
    %v221 = vunpack.c.h.bf16 %v66
    %v222 = vunpack.c.l.bf16 %v67
    %v223 = vunpack.c.h.bf16 %v67
    %v224 = vunpack.c.l.bf16 %v68
    %v225 = vunpack.c.h.bf16 %v68
    %v226 = vunpack.c.l.bf16 %v69
    %v227 = vunpack.c.h.bf16 %v69
    %v228 = vunpack.c.l.bf16 %v70
    %v229 = vunpack.c.h.bf16 %v70
    %v230 = vunpack.c.l.bf16 %v71
    %v231 = vunpack.c.h.bf16 %v71
    %v232 = vunpack.c.l.bf16 %v72
    %v233 = vunpack.c.h.bf16 %v72
    %v234 = vunpack.c.l.bf16 %v73
    %v235 = vunpack.c.h.bf16 %v73
    %v236 = vunpack.c.l.bf16 %v74
    %v237 = vunpack.c.h.bf16 %v74
    %v238 = vunpack.c.l.bf16 %v75
    %v239 = vunpack.c.h.bf16 %v75
    %v240 = vunpack.c.l.bf16 %v76
    %v241 = vunpack.c.h.bf16 %v76
    %v242 = vunpack.c.l.bf16 %v77
    %v243 = vunpack.c.h.bf16 %v77
    %v244 = vunpack.c.l.bf16 %v78
    %v245 = vunpack.c.h.bf16 %v78
    %v246 = vunpack.c.l.bf16 %v79
    %v247 = vunpack.c.h.bf16 %v79
    %v248 = vunpack.c.l.bf16 %v80
    %v249 = vunpack.c.h.bf16 %v80
    %v250 = vunpack.c.l.bf16 %v81
    %v251 = vunpack.c.h.bf16 %v81
    %v252 = vunpack.c.l.bf16 %v82
    %v253 = vunpack.c.h.bf16 %v82
    %v254 = vunpack.c.l.bf16 %v83
    %v255 = vunpack.c.h.bf16 %v83
    %v256 = vunpack.c.l.bf16 %v84
    %v257 = vunpack.c.h.bf16 %v84
    %v258 = vunpack.c.l.bf16 %v85
    %v259 = vunpack.c.h.bf16 %v85
    %v260 = vunpack.c.l.bf16 %v86
    %v261 = vunpack.c.h.bf16 %v86
    %v262 = vunpack.c.l.bf16 %v87
    %v263 = vunpack.c.h.bf16 %v87
    %v264 = vunpack.c.l.bf16 %v88
    %v265 = vunpack.c.h.bf16 %v88
    %v266 = vunpack.c.l.bf16 %v89
    %v267 = vunpack.c.h.bf16 %v89
    %v268 = vunpack.c.l.bf16 %v90
    %v269 = vunpack.c.h.bf16 %v90
    %v270 = vunpack.c.l.bf16 %v91
    %v271 = vunpack.c.h.bf16 %v91
    %v272 = vunpack.c.l.bf16 %v92
    %v273 = vunpack.c.h.bf16 %v92
    %v274 = vunpack.c.l.bf16 %v93
    %v275 = vunpack.c.h.bf16 %v93
    %v276 = vunpack.c.l.bf16 %v94
    %v277 = vunpack.c.h.bf16 %v94
    %v278 = vunpack.c.l.bf16 %v95
    %v279 = vunpack.c.h.bf16 %v95
    %v280 = vunpack.c.l.bf16 %v96
    %v281 = vunpack.c.h.bf16 %v96
    %v282 = vunpack.c.l.bf16 %v97
    %v283 = vunpack.c.h.bf16 %v97
    %v284 = vunpack.c.l.bf16 %v98
    %v285 = vunpack.c.h.bf16 %v98
    %v286 = vunpack.c.l.bf16 %v99
    %v287 = vunpack.c.h.bf16 %v99
    %v288 = vunpack.c.l.bf16 %v100
    %v289 = vunpack.c.h.bf16 %v100
    %v290 = vunpack.c.l.bf16 %v101
    %v291 = vunpack.c.h.bf16 %v101
    %v292 = vunpack.c.l.bf16 %v102
    %v293 = vunpack.c.h.bf16 %v102
    %v294 = vunpack.c.l.bf16 %v103
    %v295 = vunpack.c.h.bf16 %v103
    %v296 = vunpack.c.l.bf16 %v104
    %v297 = vunpack.c.h.bf16 %v104
    %v298 = vunpack.c.l.bf16 %v105
    %v299 = vunpack.c.h.bf16 %v105
    %v300 = vunpack.c.l.bf16 %v106
    %v301 = vunpack.c.h.bf16 %v106
    %v302 = vunpack.c.l.bf16 %v107
    %v303 = vunpack.c.h.bf16 %v107
    %v304 = vunpack.c.l.bf16 %v108
    %v305 = vunpack.c.h.bf16 %v108
    %v306 = vunpack.c.l.bf16 %v109
    %v307 = vunpack.c.h.bf16 %v109
    %v308 = vunpack.c.l.bf16 %v110
    %v309 = vunpack.c.h.bf16 %v110
    %v310 = vunpack.c.l.bf16 %v111
    %v311 = vunpack.c.h.bf16 %v111
    %v312 = vunpack.c.l.bf16 %v112
    %v313 = vunpack.c.h.bf16 %v112
    %v314 = vunpack.c.l.bf16 %v113
    %v315 = vunpack.c.h.bf16 %v113
    %v316 = vunpack.c.l.bf16 %v114
    %v317 = vunpack.c.h.bf16 %v114
    %v318 = vunpack.c.l.bf16 %v115
    %v319 = vunpack.c.h.bf16 %v115
    %v320 = vunpack.c.l.bf16 %v116
    %v321 = vunpack.c.h.bf16 %v116
    %v322 = vunpack.c.l.bf16 %v117
    %v323 = vunpack.c.h.bf16 %v117
    %v324 = vunpack.c.l.bf16 %v118
    %v325 = vunpack.c.h.bf16 %v118
    %v326 = vunpack.c.l.bf16 %v119
    %v327 = vunpack.c.h.bf16 %v119
    %v328 = vunpack.c.l.bf16 %v120
    %v329 = vunpack.c.h.bf16 %v120
    %v330 = vunpack.c.l.bf16 %v121
    %v331 = vunpack.c.h.bf16 %v121
    %v332 = vunpack.c.l.bf16 %v122
    %v333 = vunpack.c.h.bf16 %v122
    %v334 = vunpack.c.l.bf16 %v123
    %v335 = vunpack.c.h.bf16 %v123
    %v336 = vunpack.c.l.bf16 %v124
    %v337 = vunpack.c.h.bf16 %v124
    %v338 = vunpack.c.l.bf16 %v125
    %v339 = vunpack.c.h.bf16 %v125
    %v340 = vunpack.c.l.bf16 %v126
    %v341 = vunpack.c.h.bf16 %v126
    %v342 = vunpack.c.l.bf16 %v127
    %v343 = vunpack.c.h.bf16 %v127
    %v344 = vunpack.c.l.bf16 %v128
    %v345 = vunpack.c.h.bf16 %v128
    %v346 = vunpack.c.l.bf16 %v129
    %v347 = vunpack.c.h.bf16 %v129
    %v348 = vunpack.c.l.bf16 %v130
    %v349 = vunpack.c.h.bf16 %v130
    %v350 = vunpack.c.l.bf16 %v131
    %v351 = vunpack.c.h.bf16 %v131
    %v352 = vunpack.c.l.bf16 %v132
    %v353 = vunpack.c.h.bf16 %v132
    %v354 = vunpack.c.l.bf16 %v133
    %v355 = vunpack.c.h.bf16 %v133
    %v356 = vunpack.c.l.bf16 %v134
    %v357 = vunpack.c.h.bf16 %v134
    %v358 = vunpack.c.l.bf16 %v135
    %v359 = vunpack.c.h.bf16 %v135
    %v360 = vunpack.c.l.bf16 %v136
    %v361 = vunpack.c.h.bf16 %v136
    %v362 = vunpack.c.l.bf16 %v137
    %v363 = vunpack.c.h.bf16 %v137
    %v364 = vunpack.c.l.bf16 %v138
    %v365 = vunpack.c.h.bf16 %v138
    %v366 = vunpack.c.l.bf16 %v139
    %v367 = vunpack.c.h.bf16 %v139
    %v368 = vunpack.c.l.bf16 %v140
    %v369 = vunpack.c.h.bf16 %v140
    %v370 = vunpack.c.l.bf16 %v141
    %v371 = vunpack.c.h.bf16 %v141
    %v372 = vunpack.c.l.bf16 %v142
    %v373 = vunpack.c.h.bf16 %v142
    %v374 = vunpack.c.l.bf16 %v143
    %v375 = vunpack.c.h.bf16 %v143
    %v376 = vunpack.c.l.bf16 %v144
    %v377 = vunpack.c.h.bf16 %v144
    %v378 = vunpack.c.l.bf16 %v145
    %v379 = vunpack.c.h.bf16 %v145
    %v380 = vunpack.c.l.bf16 %v146
    %v381 = vunpack.c.h.bf16 %v146
    %v382 = vunpack.c.l.bf16 %v147
    %v383 = vunpack.c.h.bf16 %v147
    %v384 = vunpack.c.l.bf16 %v148
    %v385 = vunpack.c.h.bf16 %v148
    %v386 = vunpack.c.l.bf16 %v149
    %v387 = vunpack.c.h.bf16 %v149
    %v388 = vunpack.c.l.bf16 %v150
    %v389 = vunpack.c.h.bf16 %v150
    %v390 = vunpack.c.l.bf16 %v151
    %v391 = vunpack.c.h.bf16 %v151
    %v392 = vunpack.c.l.bf16 %v152
    %v393 = vunpack.c.h.bf16 %v152
    %v394 = vunpack.c.l.bf16 %v153
    %v395 = vunpack.c.h.bf16 %v153
    %v396 = vunpack.c.l.bf16 %v154
    %v397 = vunpack.c.h.bf16 %v154
    %v398 = vunpack.c.l.bf16 %v155
    %v399 = vunpack.c.h.bf16 %v155
    %v400 = vunpack.c.l.bf16 %v156
    %v401 = vunpack.c.h.bf16 %v156
    %v402 = vunpack.c.l.bf16 %v157
    %v403 = vunpack.c.h.bf16 %v157
    %v404 = vunpack.c.l.bf16 %v158
    %v405 = vunpack.c.h.bf16 %v158
    %v406 = vunpack.c.l.bf16 %v159
    %v407 = vunpack.c.h.bf16 %v159
    %v408 = vunpack.c.l.bf16 %v160
    %v409 = vunpack.c.h.bf16 %v160
    %v410 = vunpack.c.l.bf16 %v161
    %v411 = vunpack.c.h.bf16 %v161
    %v412 = vunpack.c.l.bf16 %v162
    %v413 = vunpack.c.h.bf16 %v162
    %v414 = vunpack.c.l.bf16 %v163
    %v415 = vunpack.c.h.bf16 %v163
    %v416 = vunpack.c.l.bf16 %v164
    %v417 = vunpack.c.h.bf16 %v164
    %v418 = vunpack.c.l.bf16 %v165
    %v419 = vunpack.c.h.bf16 %v165
    %v420 = vunpack.c.l.bf16 %v166
    %v421 = vunpack.c.h.bf16 %v166
    %v422 = vunpack.c.l.bf16 %v167
    %v423 = vunpack.c.h.bf16 %v167
    %424 = vmatprep.subr.mxu0 %v169
    %425 = vmatpush1.msra.mxu0 %v168
    %426 = vmatprep.subr.mxu0 %v177
    %427 = vmatpush1.msra.mxu0 %v176
    %428 = vmatprep.subr.mxu0 %v185
    %429 = vmatpush1.msra.mxu0 %v184
    %430 = vmatprep.subr.mxu0 %v193
    %431 = vmatpush1.msra.mxu0 %v192
    %432 = vmatprep.subr.mxu0 %v201
    %433 = vmatpush1.msra.mxu0 %v200
    %434 = vmatprep.subr.mxu0 %v209
    %435 = vmatpush1.msra.mxu0 %v208
    %436 = vmatprep.subr.mxu0 %v217
    %437 = vmatpush1.msra.mxu0 %v216
    %438 = vmatprep.subr.mxu0 %v225
    %439 = vmatpush1.msra.mxu0 %v224
    %440 = vmatprep.subr.mxu0 %v233
    %441 = vmatpush1.msra.mxu0 %v232
    %442 = vmatprep.subr.mxu0 %v241
    %443 = vmatpush1.msra.mxu0 %v240
    %444 = vmatprep.subr.mxu0 %v249
    %445 = vmatpush1.msra.mxu0 %v248
    %446 = vmatprep.subr.mxu0 %v257
    %447 = vmatpush1.msra.mxu0 %v256
    %448 = vmatprep.subr.mxu0 %v265
    %449 = vmatpush1.msra.mxu0 %v264
    %450 = vmatprep.subr.mxu0 %v273
    %451 = vmatpush1.msra.mxu0 %v272
    %452 = vmatprep.subr.mxu0 %v281
    %453 = vmatpush1.msra.mxu0 %v280
    %454 = vmatprep.subr.mxu0 %v289
    %455 = vmatpush1.msra.mxu0 %v288
    %456 = vmatprep.subr.mxu0 %v297
    %457 = vmatpush1.msra.mxu0 %v296
    %458 = vmatprep.subr.mxu0 %v305
    %459 = vmatpush1.msra.mxu0 %v304
    %460 = vmatprep.subr.mxu0 %v313
    %461 = vmatpush1.msra.mxu0 %v312
    %462 = vmatprep.subr.mxu0 %v321
    %463 = vmatpush1.msra.mxu0 %v320
    %464 = vmatprep.subr.mxu0 %v329
    %465 = vmatpush1.msra.mxu0 %v328
    %466 = vmatprep.subr.mxu0 %v337
    %467 = vmatpush1.msra.mxu0 %v336
    %468 = vmatprep.subr.mxu0 %v345
    %469 = vmatpush1.msra.mxu0 %v344
    %470 = vmatprep.subr.mxu0 %v353
    %471 = vmatpush1.msra.mxu0 %v352
    %472 = vmatprep.subr.mxu0 %v361
    %473 = vmatpush1.msra.mxu0 %v360
    %474 = vmatprep.subr.mxu0 %v369
    %475 = vmatpush1.msra.mxu0 %v368
    %476 = vmatprep.subr.mxu0 %v377
    %477 = vmatpush1.msra.mxu0 %v376
    %478 = vmatprep.subr.mxu0 %v385
    %479 = vmatpush1.msra.mxu0 %v384
    %480 = vmatprep.subr.mxu0 %v393
    %481 = vmatpush1.msra.mxu0 %v392
    %482 = vmatprep.subr.mxu0 %v401
    %483 = vmatpush1.msra.mxu0 %v400
    %484 = vmatprep.subr.mxu0 %v409
    %485 = vmatpush1.msra.mxu0 %v408
    %486 = vmatprep.subr.mxu0 %v417
    %487 = vmatpush1.msra.mxu0 %v416
    %488 = vmatprep.mubr.f32.mxu0 %v39
    %489 = vmatmul.mubr.f32.gmra.mrb[0].mxu0 %v38
    %v490 = vpop.f32.mrb[0].mxu0
    %v491 = vadd.f32 0.0, %v490
    %v492 = vpop.f32.mrb[0].mxu0
    %v493 = vadd.f32 0.0, %v492
    %494 = vdwg.mxu0
    %495 = vmatprep.subr.mxu0 %v171
    %496 = vmatpush1.msra.mxu0 %v170
    %497 = vmatprep.subr.mxu0 %v179
    %498 = vmatpush1.msra.mxu0 %v178
    %499 = vmatprep.subr.mxu0 %v187
    %500 = vmatpush1.msra.mxu0 %v186
    %501 = vmatprep.subr.mxu0 %v195
    %502 = vmatpush1.msra.mxu0 %v194
    %503 = vmatprep.subr.mxu0 %v203
    %504 = vmatpush1.msra.mxu0 %v202
    %505 = vmatprep.subr.mxu0 %v211
    %506 = vmatpush1.msra.mxu0 %v210
    %507 = vmatprep.subr.mxu0 %v219
    %508 = vmatpush1.msra.mxu0 %v218
    %509 = vmatprep.subr.mxu0 %v227
    %510 = vmatpush1.msra.mxu0 %v226
    %511 = vmatprep.subr.mxu0 %v235
    %512 = vmatpush1.msra.mxu0 %v234
    %513 = vmatprep.subr.mxu0 %v243
    %514 = vmatpush1.msra.mxu0 %v242
    %515 = vmatprep.subr.mxu0 %v251
    %516 = vmatpush1.msra.mxu0 %v250
    %517 = vmatprep.subr.mxu0 %v259
    %518 = vmatpush1.msra.mxu0 %v258
    %519 = vmatprep.subr.mxu0 %v267
    %520 = vmatpush1.msra.mxu0 %v266
    %521 = vmatprep.subr.mxu0 %v275
    %522 = vmatpush1.msra.mxu0 %v274
    %523 = vmatprep.subr.mxu0 %v283
    %524 = vmatpush1.msra.mxu0 %v282
    %525 = vmatprep.subr.mxu0 %v291
    %526 = vmatpush1.msra.mxu0 %v290
    %527 = vmatprep.subr.mxu0 %v299
    %528 = vmatpush1.msra.mxu0 %v298
    %529 = vmatprep.subr.mxu0 %v307
    %530 = vmatpush1.msra.mxu0 %v306
    %531 = vmatprep.subr.mxu0 %v315
    %532 = vmatpush1.msra.mxu0 %v314
    %533 = vmatprep.subr.mxu0 %v323
    %534 = vmatpush1.msra.mxu0 %v322
    %535 = vmatprep.subr.mxu0 %v331
    %536 = vmatpush1.msra.mxu0 %v330
    %537 = vmatprep.subr.mxu0 %v339
    %538 = vmatpush1.msra.mxu0 %v338
    %539 = vmatprep.subr.mxu0 %v347
    %540 = vmatpush1.msra.mxu0 %v346
    %541 = vmatprep.subr.mxu0 %v355
    %542 = vmatpush1.msra.mxu0 %v354
    %543 = vmatprep.subr.mxu0 %v363
    %544 = vmatpush1.msra.mxu0 %v362
    %545 = vmatprep.subr.mxu0 %v371
    %546 = vmatpush1.msra.mxu0 %v370
    %547 = vmatprep.subr.mxu0 %v379
    %548 = vmatpush1.msra.mxu0 %v378
    %549 = vmatprep.subr.mxu0 %v387
    %550 = vmatpush1.msra.mxu0 %v386
    %551 = vmatprep.subr.mxu0 %v395
    %552 = vmatpush1.msra.mxu0 %v394
    %553 = vmatprep.subr.mxu0 %v403
    %554 = vmatpush1.msra.mxu0 %v402
    %555 = vmatprep.subr.mxu0 %v411
    %556 = vmatpush1.msra.mxu0 %v410
    %557 = vmatprep.subr.mxu0 %v419
    %558 = vmatpush1.msra.mxu0 %v418
    %559 = vmatprep.mubr.f32.mxu0 %v39
    %560 = vmatmul.mubr.f32.gmra.mrb[0].mxu0 %v38
    %v561 = vpop.f32.mrb[0].mxu0
    %v562 = vadd.f32 0.0, %v561
    %v563 = vpop.f32.mrb[0].mxu0
    %v564 = vadd.f32 0.0, %v563
    %565 = vdwg.mxu0
    %566 = vmatprep.subr.mxu0 %v173
    %567 = vmatpush1.msra.mxu0 %v172
    %568 = vmatprep.subr.mxu0 %v181
    %569 = vmatpush1.msra.mxu0 %v180
    %570 = vmatprep.subr.mxu0 %v189
    %571 = vmatpush1.msra.mxu0 %v188
    %572 = vmatprep.subr.mxu0 %v197
    %573 = vmatpush1.msra.mxu0 %v196
    %574 = vmatprep.subr.mxu0 %v205
    %575 = vmatpush1.msra.mxu0 %v204
    %576 = vmatprep.subr.mxu0 %v213
    %577 = vmatpush1.msra.mxu0 %v212
    %578 = vmatprep.subr.mxu0 %v221
    %579 = vmatpush1.msra.mxu0 %v220
    %580 = vmatprep.subr.mxu0 %v229
    %581 = vmatpush1.msra.mxu0 %v228
    %582 = vmatprep.subr.mxu0 %v237
    %583 = vmatpush1.msra.mxu0 %v236
    %584 = vmatprep.subr.mxu0 %v245
    %585 = vmatpush1.msra.mxu0 %v244
    %586 = vmatprep.subr.mxu0 %v253
    %587 = vmatpush1.msra.mxu0 %v252
    %588 = vmatprep.subr.mxu0 %v261
    %589 = vmatpush1.msra.mxu0 %v260
    %590 = vmatprep.subr.mxu0 %v269
    %591 = vmatpush1.msra.mxu0 %v268
    %592 = vmatprep.subr.mxu0 %v277
    %593 = vmatpush1.msra.mxu0 %v276
    %594 = vmatprep.subr.mxu0 %v285
    %595 = vmatpush1.msra.mxu0 %v284
    %596 = vmatprep.subr.mxu0 %v293
    %597 = vmatpush1.msra.mxu0 %v292
    %598 = vmatprep.subr.mxu0 %v301
    %599 = vmatpush1.msra.mxu0 %v300
    %600 = vmatprep.subr.mxu0 %v309
    %601 = vmatpush1.msra.mxu0 %v308
    %602 = vmatprep.subr.mxu0 %v317
    %603 = vmatpush1.msra.mxu0 %v316
    %604 = vmatprep.subr.mxu0 %v325
    %605 = vmatpush1.msra.mxu0 %v324
    %606 = vmatprep.subr.mxu0 %v333
    %607 = vmatpush1.msra.mxu0 %v332
    %608 = vmatprep.subr.mxu0 %v341
    %609 = vmatpush1.msra.mxu0 %v340
    %610 = vmatprep.subr.mxu0 %v349
    %611 = vmatpush1.msra.mxu0 %v348
    %612 = vmatprep.subr.mxu0 %v357
    %613 = vmatpush1.msra.mxu0 %v356
    %614 = vmatprep.subr.mxu0 %v365
    %615 = vmatpush1.msra.mxu0 %v364
    %616 = vmatprep.subr.mxu0 %v373
    %617 = vmatpush1.msra.mxu0 %v372
    %618 = vmatprep.subr.mxu0 %v381
    %619 = vmatpush1.msra.mxu0 %v380
    %620 = vmatprep.subr.mxu0 %v389
    %621 = vmatpush1.msra.mxu0 %v388
    %622 = vmatprep.subr.mxu0 %v397
    %623 = vmatpush1.msra.mxu0 %v396
    %624 = vmatprep.subr.mxu0 %v405
    %625 = vmatpush1.msra.mxu0 %v404
    %626 = vmatprep.subr.mxu0 %v413
    %627 = vmatpush1.msra.mxu0 %v412
    %628 = vmatprep.subr.mxu0 %v421
    %629 = vmatpush1.msra.mxu0 %v420
    %630 = vmatprep.mubr.f32.mxu0 %v39
    %631 = vmatmul.mubr.f32.gmra.mrb[0].mxu0 %v38
    %v632 = vpop.f32.mrb[0].mxu0
    %v633 = vadd.f32 0.0, %v632
    %v634 = vpop.f32.mrb[0].mxu0
    %v635 = vadd.f32 0.0, %v634
    %636 = vdwg.mxu0
    %637 = vmatprep.subr.mxu0 %v175
    %638 = vmatpush1.msra.mxu0 %v174
    %639 = vmatprep.subr.mxu0 %v183
    %640 = vmatpush1.msra.mxu0 %v182
    %641 = vmatprep.subr.mxu0 %v191
    %642 = vmatpush1.msra.mxu0 %v190
    %643 = vmatprep.subr.mxu0 %v199
    %644 = vmatpush1.msra.mxu0 %v198
    %645 = vmatprep.subr.mxu0 %v207
    %646 = vmatpush1.msra.mxu0 %v206
    %647 = vmatprep.subr.mxu0 %v215
    %648 = vmatpush1.msra.mxu0 %v214
    %649 = vmatprep.subr.mxu0 %v223
    %650 = vmatpush1.msra.mxu0 %v222
    %651 = vmatprep.subr.mxu0 %v231
    %652 = vmatpush1.msra.mxu0 %v230
    %653 = vmatprep.subr.mxu0 %v239
    %654 = vmatpush1.msra.mxu0 %v238
    %655 = vmatprep.subr.mxu0 %v247
    %656 = vmatpush1.msra.mxu0 %v246
    %657 = vmatprep.subr.mxu0 %v255
    %658 = vmatpush1.msra.mxu0 %v254
    %659 = vmatprep.subr.mxu0 %v263
    %660 = vmatpush1.msra.mxu0 %v262
    %661 = vmatprep.subr.mxu0 %v271
    %662 = vmatpush1.msra.mxu0 %v270
    %663 = vmatprep.subr.mxu0 %v279
    %664 = vmatpush1.msra.mxu0 %v278
    %665 = vmatprep.subr.mxu0 %v287
    %666 = vmatpush1.msra.mxu0 %v286
    %667 = vmatprep.subr.mxu0 %v295
    %668 = vmatpush1.msra.mxu0 %v294
    %669 = vmatprep.subr.mxu0 %v303
    %670 = vmatpush1.msra.mxu0 %v302
    %671 = vmatprep.subr.mxu0 %v311
    %672 = vmatpush1.msra.mxu0 %v310
    %673 = vmatprep.subr.mxu0 %v319
    %674 = vmatpush1.msra.mxu0 %v318
    %675 = vmatprep.subr.mxu0 %v327
    %676 = vmatpush1.msra.mxu0 %v326
    %677 = vmatprep.subr.mxu0 %v335
    %678 = vmatpush1.msra.mxu0 %v334
    %679 = vmatprep.subr.mxu0 %v343
    %680 = vmatpush1.msra.mxu0 %v342
    %681 = vmatprep.subr.mxu0 %v351
    %682 = vmatpush1.msra.mxu0 %v350
    %683 = vmatprep.subr.mxu0 %v359
    %684 = vmatpush1.msra.mxu0 %v358
    %685 = vmatprep.subr.mxu0 %v367
    %686 = vmatpush1.msra.mxu0 %v366
    %687 = vmatprep.subr.mxu0 %v375
    %688 = vmatpush1.msra.mxu0 %v374
    %689 = vmatprep.subr.mxu0 %v383
    %690 = vmatpush1.msra.mxu0 %v382
    %691 = vmatprep.subr.mxu0 %v391
    %692 = vmatpush1.msra.mxu0 %v390
    %693 = vmatprep.subr.mxu0 %v399
    %694 = vmatpush1.msra.mxu0 %v398
    %695 = vmatprep.subr.mxu0 %v407
    %696 = vmatpush1.msra.mxu0 %v406
    %697 = vmatprep.subr.mxu0 %v415
    %698 = vmatpush1.msra.mxu0 %v414
    %699 = vmatprep.subr.mxu0 %v423
    %700 = vmatpush1.msra.mxu0 %v422
    %701 = vmatprep.mubr.f32.mxu0 %v39
    %702 = vmatmul.mubr.f32.gmra.mrb[0].mxu0 %v38
    %v703 = vpop.f32.mrb[0].mxu0
    %v704 = vadd.f32 0.0, %v703
    %v705 = vpop.f32.mrb[0].mxu0
    %v706 = vadd.f32 0.0, %v705
    %707 = vdwg.mxu0
    %708 = vst [vmem:[#allocation7] sm:$0xff] %v491
    %709 = vst [vmem:[#allocation7 + $0x8] sm:$0xff] %v493
    %710 = vst [vmem:[#allocation7 + $0x10] sm:$0xff] %v562
    %711 = vst [vmem:[#allocation7 + $0x18] sm:$0xff] %v564
    %712 = vst [vmem:[#allocation7 + $0x20] sm:$0xff] %v633
    %713 = vst [vmem:[#allocation7 + $0x28] sm:$0xff] %v635
    %714 = vst [vmem:[#allocation7 + $0x30] sm:$0xff] %v704
    %715 = vst [vmem:[#allocation7 + $0x38] sm:$0xff] %v706
    // Predicated region
    $region18: #{tpu_custom_call.1} parent=1 // pred_check
      _
    $region19: #{tpu_custom_call.1} parent=1 // pred_check_branch
      %717 = sbr.rel (0) target = $region21
    $region20: #{tpu_custom_call.1} parent=1 // pred_region
      %s719 = ssub.s32 1024, 1024
      %720 = vsyncadd [#allocation4], %s719
      %s722 = sshll.u32 [#allocation7], 4
      %s723 = int_to_ptr.vmem [resolvable:$true] %s722
      %725 = dma.vmem_to_hbm [thread:$0]  %s723, 1024, %s2, [#allocation4]
    $region21: #{tpu_custom_call.1} parent=1 // pred_fallthru
      _
    // Predicated region
    $region22: #{tpu_custom_call.1} parent=1 // pred_check
      _
    $region23: #{tpu_custom_call.1} parent=1 // pred_check_branch
      %727 = sbr.rel (0) target = $region25
    $region24: #{tpu_custom_call.1} parent=1 // pred_region
      %728 = dma.done [#allocation4], 1024
    $region25: #{tpu_custom_call.1} parent=1 // pred_fallthru
      _
    %729 = vsyncpa [#allocation3], 1
    %730 = vsyncpa [#allocation6], 1
    %731 = vsyncpa [#allocation4], 1

// kernel: tpu_custom_call.1
$region0: #{tpu_custom_call.1}
  #allocation0 [shape = 'u32[]', space=smem, size = 0x4, offset = 0x4, fixed_abs, tag = 'smem constant byte address 0x4 - core index']
  #allocation1 [shape = 'u32[144,128]{1,0:T(1,128)}', space=vmem, size = 0x12000, scoped, tag = 'internal scratch']
  %s0 = inlined_call_operand.hbm [shape: f32[8,256], index: 0, kind: input, shape index: {}]
  %s1 = inlined_call_operand.hbm [shape: bf16[256,1024], index: 1, kind: input, shape index: {}]
  %s2 = inlined_call_operand.hbm [shape: f32[8,1024], index: 2, kind: output, shape index: {}]
  %s3 = sld [smem:[#allocation0]]
  $region26: #{tpu_custom_call.1} parent=0
    _
  %s5 = ssub.s32 1, %s3
  %s6 = scalar_select 0, %s5, %s3
  $region1: #{tpu_custom_call.1} parent=0
    #allocation2 [shape = 'u8[8192]{0}', space=vmem, size = 0x2000, scoped, tag = 'input window, operand 0, single buffered']
    #allocation3 [shape = 's32[1]{0}', space=sflag, size = 0x4, scoped, tag = 'scoped memory for tpu_custom_call.1']
    #allocation4 [shape = 's32[1]{0}', space=sflag, size = 0x4, scoped, tag = 'scoped memory for tpu_custom_call.1']
    #allocation5 [shape = 'u8[524288]{0}', space=vmem, size = 0x80000, scoped, tag = 'input window, operand 1, single buffered']
    #allocation6 [shape = 's32[1]{0}', space=sflag, size = 0x4, scoped, tag = 'scoped memory for tpu_custom_call.1']
    #allocation7 [shape = 'u8[32768]{0}', space=vmem, size = 0x8000, scoped, tag = 'output window, operand 0, single buffered']
    %7 = vsyncpa [#allocation3], 0
    %8 = vsyncpa [#allocation6], 0
    %9 = vsyncpa [#allocation4], 0
    // Predicated region
    $region2: #{tpu_custom_call.1} parent=1 // pred_check
      _
    $region3: #{tpu_custom_call.1} parent=1 // pred_check_branch
      %11 = sbr.rel (0) target = $region5
    $region4: #{tpu_custom_call.1} parent=1 // pred_region
      %s13 = ssub.s32 256, 256
      %14 = vsyncadd [#allocation3], %s13
      %s16 = sshll.u32 [#allocation2], 4
      %s17 = int_to_ptr.vmem [resolvable:$true] %s16
      %19 = dma.hbm_to_vmem [thread:$0]  %s0, 256, %s17, [#allocation3]
    $region5: #{tpu_custom_call.1} parent=1 // pred_fallthru
      _
    // Predicated region
    $region6: #{tpu_custom_call.1} parent=1 // pred_check
      _
    $region7: #{tpu_custom_call.1} parent=1 // pred_check_branch
      %21 = sbr.rel (0) target = $region9
    $region8: #{tpu_custom_call.1} parent=1 // pred_region
      %s23 = ssub.s32 16384, 16384
      %24 = vsyncadd [#allocation6], %s23
      %s25 = sshll.u32 [#allocation5], 4
      %s26 = int_to_ptr.vmem [resolvable:$true] %s25
      %31 = dma.hbm_to_vmem [thread:$0]  %s1, 16384, %s26, [#allocation6], 512, 512, 32
    $region9: #{tpu_custom_call.1} parent=1 // pred_fallthru
      _
    // Predicated region
    $region10: #{tpu_custom_call.1} parent=1 // pred_check
      _
    $region11: #{tpu_custom_call.1} parent=1 // pred_check_branch
      %33 = sbr.rel (0) target = $region13
    $region12: #{tpu_custom_call.1} parent=1 // pred_region
      %34 = dma.done [#allocation3], 256
    $region13: #{tpu_custom_call.1} parent=1 // pred_fallthru
      _
    // Predicated region
    $region14: #{tpu_custom_call.1} parent=1 // pred_check
      _
    $region15: #{tpu_custom_call.1} parent=1 // pred_check_branch
      %36 = sbr.rel (0) target = $region17
    $region16: #{tpu_custom_call.1} parent=1 // pred_region
      %37 = dma.done [#allocation6], 16384
    $region17: #{tpu_custom_call.1} parent=1 // pred_fallthru
      _
    %v38 = vld [vmem:[#allocation2] sm:$0xff]
    %v39 = vld [vmem:[#allocation2 + $0x8] sm:$0xff]
    %v40 = vld [vmem:[#allocation5] sm:$0xff]
    %v41 = vld [vmem:[#allocation5 + $0x8] sm:$0xff]
    %v42 = vld [vmem:[#allocation5 + $0x10] sm:$0xff]
    %v43 = vld [vmem:[#allocation5 + $0x18] sm:$0xff]
    %v44 = vld [vmem:[#allocation5 + $0x20] sm:$0xff]
    %v45 = vld [vmem:[#allocation5 + $0x28] sm:$0xff]
    %v46 = vld [vmem:[#allocation5 + $0x30] sm:$0xff]
    %v47 = vld [vmem:[#allocation5 + $0x38] sm:$0xff]
    %v48 = vld [vmem:[#allocation5 + $0x40] sm:$0xff]
    %v49 = vld [vmem:[#allocation5 + $0x48] sm:$0xff]
    %v50 = vld [vmem:[#allocation5 + $0x50] sm:$0xff]
    %v51 = vld [vmem:[#allocation5 + $0x58] sm:$0xff]
    %v52 = vld [vmem:[#allocation5 + $0x60] sm:$0xff]
    %v53 = vld [vmem:[#allocation5 + $0x68] sm:$0xff]
    %v54 = vld [vmem:[#allocation5 + $0x70] sm:$0xff]
    %v55 = vld [vmem:[#allocation5 + $0x78] sm:$0xff]
    %v56 = vld [vmem:[#allocation5 + $0x80] sm:$0xff]
    %v57 = vld [vmem:[#allocation5 + $0x88] sm:$0xff]
    %v58 = vld [vmem:[#allocation5 + $0x90] sm:$0xff]
    %v59 = vld [vmem:[#allocation5 + $0x98] sm:$0xff]
    %v60 = vld [vmem:[#allocation5 + $0xa0] sm:$0xff]
    %v61 = vld [vmem:[#allocation5 + $0xa8] sm:$0xff]
    %v62 = vld [vmem:[#allocation5 + $0xb0] sm:$0xff]
    %v63 = vld [vmem:[#allocation5 + $0xb8] sm:$0xff]
    %v64 = vld [vmem:[#allocation5 + $0xc0] sm:$0xff]
    %v65 = vld [vmem:[#allocation5 + $0xc8] sm:$0xff]
    %v66 = vld [vmem:[#allocation5 + $0xd0] sm:$0xff]
    %v67 = vld [vmem:[#allocation5 + $0xd8] sm:$0xff]
    %v68 = vld [vmem:[#allocation5 + $0xe0] sm:$0xff]
    %v69 = vld [vmem:[#allocation5 + $0xe8] sm:$0xff]
    %v70 = vld [vmem:[#allocation5 + $0xf0] sm:$0xff]
    %v71 = vld [vmem:[#allocation5 + $0xf8] sm:$0xff]
    %v72 = vld [vmem:[#allocation5 + $0x100] sm:$0xff]
    %v73 = vld [vmem:[#allocation5 + $0x108] sm:$0xff]
    %v74 = vld [vmem:[#allocation5 + $0x110] sm:$0xff]
    %v75 = vld [vmem:[#allocation5 + $0x118] sm:$0xff]
    %v76 = vld [vmem:[#allocation5 + $0x120] sm:$0xff]
    %v77 = vld [vmem:[#allocation5 + $0x128] sm:$0xff]
    %v78 = vld [vmem:[#allocation5 + $0x130] sm:$0xff]
    %v79 = vld [vmem:[#allocation5 + $0x138] sm:$0xff]
    %v80 = vld [vmem:[#allocation5 + $0x140] sm:$0xff]
    %v81 = vld [vmem:[#allocation5 + $0x148] sm:$0xff]
    %v82 = vld [vmem:[#allocation5 + $0x150] sm:$0xff]
    %v83 = vld [vmem:[#allocation5 + $0x158] sm:$0xff]
    %v84 = vld [vmem:[#allocation5 + $0x160] sm:$0xff]
    %v85 = vld [vmem:[#allocation5 + $0x168] sm:$0xff]
    %v86 = vld [vmem:[#allocation5 + $0x170] sm:$0xff]
    %v87 = vld [vmem:[#allocation5 + $0x178] sm:$0xff]
    %v88 = vld [vmem:[#allocation5 + $0x180] sm:$0xff]
    %v89 = vld [vmem:[#allocation5 + $0x188] sm:$0xff]
    %v90 = vld [vmem:[#allocation5 + $0x190] sm:$0xff]
    %v91 = vld [vmem:[#allocation5 + $0x198] sm:$0xff]
    %v92 = vld [vmem:[#allocation5 + $0x1a0] sm:$0xff]
    %v93 = vld [vmem:[#allocation5 + $0x1a8] sm:$0xff]
    %v94 = vld [vmem:[#allocation5 + $0x1b0] sm:$0xff]
    %v95 = vld [vmem:[#allocation5 + $0x1b8] sm:$0xff]
    %v96 = vld [vmem:[#allocation5 + $0x1c0] sm:$0xff]
    %v97 = vld [vmem:[#allocation5 + $0x1c8] sm:$0xff]
    %v98 = vld [vmem:[#allocation5 + $0x1d0] sm:$0xff]
    %v99 = vld [vmem:[#allocation5 + $0x1d8] sm:$0xff]
    %v100 = vld [vmem:[#allocation5 + $0x1e0] sm:$0xff]
    %v101 = vld [vmem:[#allocation5 + $0x1e8] sm:$0xff]
    %v102 = vld [vmem:[#allocation5 + $0x1f0] sm:$0xff]
    %v103 = vld [vmem:[#allocation5 + $0x1f8] sm:$0xff]
    %v104 = vld [vmem:[#allocation5 + $0x200] sm:$0xff]
    %v105 = vld [vmem:[#allocation5 + $0x208] sm:$0xff]
    %v106 = vld [vmem:[#allocation5 + $0x210] sm:$0xff]
    %v107 = vld [vmem:[#allocation5 + $0x218] sm:$0xff]
    %v108 = vld [vmem:[#allocation5 + $0x220] sm:$0xff]
    %v109 = vld [vmem:[#allocation5 + $0x228] sm:$0xff]
    %v110 = vld [vmem:[#allocation5 + $0x230] sm:$0xff]
    %v111 = vld [vmem:[#allocation5 + $0x238] sm:$0xff]
    %v112 = vld [vmem:[#allocation5 + $0x240] sm:$0xff]
    %v113 = vld [vmem:[#allocation5 + $0x248] sm:$0xff]
    %v114 = vld [vmem:[#allocation5 + $0x250] sm:$0xff]
    %v115 = vld [vmem:[#allocation5 + $0x258] sm:$0xff]
    %v116 = vld [vmem:[#allocation5 + $0x260] sm:$0xff]
    %v117 = vld [vmem:[#allocation5 + $0x268] sm:$0xff]
    %v118 = vld [vmem:[#allocation5 + $0x270] sm:$0xff]
    %v119 = vld [vmem:[#allocation5 + $0x278] sm:$0xff]
    %v120 = vld [vmem:[#allocation5 + $0x280] sm:$0xff]
    %v121 = vld [vmem:[#allocation5 + $0x288] sm:$0xff]
    %v122 = vld [vmem:[#allocation5 + $0x290] sm:$0xff]
    %v123 = vld [vmem:[#allocation5 + $0x298] sm:$0xff]
    %v124 = vld [vmem:[#allocation5 + $0x2a0] sm:$0xff]
    %v125 = vld [vmem:[#allocation5 + $0x2a8] sm:$0xff]
    %v126 = vld [vmem:[#allocation5 + $0x2b0] sm:$0xff]
    %v127 = vld [vmem:[#allocation5 + $0x2b8] sm:$0xff]
    %v128 = vld [vmem:[#allocation5 + $0x2c0] sm:$0xff]
    %v129 = vld [vmem:[#allocation5 + $0x2c8] sm:$0xff]
    %v130 = vld [vmem:[#allocation5 + $0x2d0] sm:$0xff]
    %v131 = vld [vmem:[#allocation5 + $0x2d8] sm:$0xff]
    %v132 = vld [vmem:[#allocation5 + $0x2e0] sm:$0xff]
    %v133 = vld [vmem:[#allocation5 + $0x2e8] sm:$0xff]
    %v134 = vld [vmem:[#allocation5 + $0x2f0] sm:$0xff]
    %v135 = vld [vmem:[#allocation5 + $0x2f8] sm:$0xff]
    %v136 = vld [vmem:[#allocation5 + $0x300] sm:$0xff]
    %v137 = vld [vmem:[#allocation5 + $0x308] sm:$0xff]
    %v138 = vld [vmem:[#allocation5 + $0x310] sm:$0xff]
    %v139 = vld [vmem:[#allocation5 + $0x318] sm:$0xff]
    %v140 = vld [vmem:[#allocation5 + $0x320] sm:$0xff]
    %v141 = vld [vmem:[#allocation5 + $0x328] sm:$0xff]
    %v142 = vld [vmem:[#allocation5 + $0x330] sm:$0xff]
    %v143 = vld [vmem:[#allocation5 + $0x338] sm:$0xff]
    %v144 = vld [vmem:[#allocation5 + $0x340] sm:$0xff]
    %v145 = vld [vmem:[#allocation5 + $0x348] sm:$0xff]
    %v146 = vld [vmem:[#allocation5 + $0x350] sm:$0xff]
    %v147 = vld [vmem:[#allocation5 + $0x358] sm:$0xff]
    %v148 = vld [vmem:[#allocation5 + $0x360] sm:$0xff]
    %v149 = vld [vmem:[#allocation5 + $0x368] sm:$0xff]
    %v150 = vld [vmem:[#allocation5 + $0x370] sm:$0xff]
    %v151 = vld [vmem:[#allocation5 + $0x378] sm:$0xff]
    %v152 = vld [vmem:[#allocation5 + $0x380] sm:$0xff]
    %v153 = vld [vmem:[#allocation5 + $0x388] sm:$0xff]
    %v154 = vld [vmem:[#allocation5 + $0x390] sm:$0xff]
    %v155 = vld [vmem:[#allocation5 + $0x398] sm:$0xff]
    %v156 = vld [vmem:[#allocation5 + $0x3a0] sm:$0xff]
    %v157 = vld [vmem:[#allocation5 + $0x3a8] sm:$0xff]
    %v158 = vld [vmem:[#allocation5 + $0x3b0] sm:$0xff]
    %v159 = vld [vmem:[#allocation5 + $0x3b8] sm:$0xff]
    %v160 = vld [vmem:[#allocation5 + $0x3c0] sm:$0xff]
    %v161 = vld [vmem:[#allocation5 + $0x3c8] sm:$0xff]
    %v162 = vld [vmem:[#allocation5 + $0x3d0] sm:$0xff]
    %v163 = vld [vmem:[#allocation5 + $0x3d8] sm:$0xff]
    %v164 = vld [vmem:[#allocation5 + $0x3e0] sm:$0xff]
    %v165 = vld [vmem:[#allocation5 + $0x3e8] sm:$0xff]
    %v166 = vld [vmem:[#allocation5 + $0x3f0] sm:$0xff]
    %v167 = vld [vmem:[#allocation5 + $0x3f8] sm:$0xff]
    %v168 = vunpack.c.l.bf16 %v40
    %v169 = vunpack.c.h.bf16 %v40
    %v170 = vunpack.c.l.bf16 %v41
    %v171 = vunpack.c.h.bf16 %v41
    %v172 = vunpack.c.l.bf16 %v42
    %v173 = vunpack.c.h.bf16 %v42
    %v174 = vunpack.c.l.bf16 %v43
    %v175 = vunpack.c.h.bf16 %v43
    %v176 = vunpack.c.l.bf16 %v44
    %v177 = vunpack.c.h.bf16 %v44
    %v178 = vunpack.c.l.bf16 %v45
    %v179 = vunpack.c.h.bf16 %v45
    %v180 = vunpack.c.l.bf16 %v46
    %v181 = vunpack.c.h.bf16 %v46
    %v182 = vunpack.c.l.bf16 %v47
    %v183 = vunpack.c.h.bf16 %v47
    %v184 = vunpack.c.l.bf16 %v48
    %v185 = vunpack.c.h.bf16 %v48
    %v186 = vunpack.c.l.bf16 %v49
    %v187 = vunpack.c.h.bf16 %v49
    %v188 = vunpack.c.l.bf16 %v50
    %v189 = vunpack.c.h.bf16 %v50
    %v190 = vunpack.c.l.bf16 %v51
    %v191 = vunpack.c.h.bf16 %v51
    %v192 = vunpack.c.l.bf16 %v52
    %v193 = vunpack.c.h.bf16 %v52
    %v194 = vunpack.c.l.bf16 %v53
    %v195 = vunpack.c.h.bf16 %v53
    %v196 = vunpack.c.l.bf16 %v54
    %v197 = vunpack.c.h.bf16 %v54
    %v198 = vunpack.c.l.bf16 %v55
    %v199 = vunpack.c.h.bf16 %v55
    %v200 = vunpack.c.l.bf16 %v56
    %v201 = vunpack.c.h.bf16 %v56
    %v202 = vunpack.c.l.bf16 %v57
    %v203 = vunpack.c.h.bf16 %v57
    %v204 = vunpack.c.l.bf16 %v58
    %v205 = vunpack.c.h.bf16 %v58
    %v206 = vunpack.c.l.bf16 %v59
    %v207 = vunpack.c.h.bf16 %v59
    %v208 = vunpack.c.l.bf16 %v60
    %v209 = vunpack.c.h.bf16 %v60
    %v210 = vunpack.c.l.bf16 %v61
    %v211 = vunpack.c.h.bf16 %v61
    %v212 = vunpack.c.l.bf16 %v62
    %v213 = vunpack.c.h.bf16 %v62
    %v214 = vunpack.c.l.bf16 %v63
    %v215 = vunpack.c.h.bf16 %v63
    %v216 = vunpack.c.l.bf16 %v64
    %v217 = vunpack.c.h.bf16 %v64
    %v218 = vunpack.c.l.bf16 %v65
    %v219 = vunpack.c.h.bf16 %v65
    %v220 = vunpack.c.l.bf16 %v66
    %v221 = vunpack.c.h.bf16 %v66
    %v222 = vunpack.c.l.bf16 %v67
    %v223 = vunpack.c.h.bf16 %v67
    %v224 = vunpack.c.l.bf16 %v68
    %v225 = vunpack.c.h.bf16 %v68
    %v226 = vunpack.c.l.bf16 %v69
    %v227 = vunpack.c.h.bf16 %v69
    %v228 = vunpack.c.l.bf16 %v70
    %v229 = vunpack.c.h.bf16 %v70
    %v230 = vunpack.c.l.bf16 %v71
    %v231 = vunpack.c.h.bf16 %v71
    %v232 = vunpack.c.l.bf16 %v72
    %v233 = vunpack.c.h.bf16 %v72
    %v234 = vunpack.c.l.bf16 %v73
    %v235 = vunpack.c.h.bf16 %v73
    %v236 = vunpack.c.l.bf16 %v74
    %v237 = vunpack.c.h.bf16 %v74
    %v238 = vunpack.c.l.bf16 %v75
    %v239 = vunpack.c.h.bf16 %v75
    %v240 = vunpack.c.l.bf16 %v76
    %v241 = vunpack.c.h.bf16 %v76
    %v242 = vunpack.c.l.bf16 %v77
    %v243 = vunpack.c.h.bf16 %v77
    %v244 = vunpack.c.l.bf16 %v78
    %v245 = vunpack.c.h.bf16 %v78
    %v246 = vunpack.c.l.bf16 %v79
    %v247 = vunpack.c.h.bf16 %v79
    %v248 = vunpack.c.l.bf16 %v80
    %v249 = vunpack.c.h.bf16 %v80
    %v250 = vunpack.c.l.bf16 %v81
    %v251 = vunpack.c.h.bf16 %v81
    %v252 = vunpack.c.l.bf16 %v82
    %v253 = vunpack.c.h.bf16 %v82
    %v254 = vunpack.c.l.bf16 %v83
    %v255 = vunpack.c.h.bf16 %v83
    %v256 = vunpack.c.l.bf16 %v84
    %v257 = vunpack.c.h.bf16 %v84
    %v258 = vunpack.c.l.bf16 %v85
    %v259 = vunpack.c.h.bf16 %v85
    %v260 = vunpack.c.l.bf16 %v86
    %v261 = vunpack.c.h.bf16 %v86
    %v262 = vunpack.c.l.bf16 %v87
    %v263 = vunpack.c.h.bf16 %v87
    %v264 = vunpack.c.l.bf16 %v88
    %v265 = vunpack.c.h.bf16 %v88
    %v266 = vunpack.c.l.bf16 %v89
    %v267 = vunpack.c.h.bf16 %v89
    %v268 = vunpack.c.l.bf16 %v90
    %v269 = vunpack.c.h.bf16 %v90
    %v270 = vunpack.c.l.bf16 %v91
    %v271 = vunpack.c.h.bf16 %v91
    %v272 = vunpack.c.l.bf16 %v92
    %v273 = vunpack.c.h.bf16 %v92
    %v274 = vunpack.c.l.bf16 %v93
    %v275 = vunpack.c.h.bf16 %v93
    %v276 = vunpack.c.l.bf16 %v94
    %v277 = vunpack.c.h.bf16 %v94
    %v278 = vunpack.c.l.bf16 %v95
    %v279 = vunpack.c.h.bf16 %v95
    %v280 = vunpack.c.l.bf16 %v96
    %v281 = vunpack.c.h.bf16 %v96
    %v282 = vunpack.c.l.bf16 %v97
    %v283 = vunpack.c.h.bf16 %v97
    %v284 = vunpack.c.l.bf16 %v98
    %v285 = vunpack.c.h.bf16 %v98
    %v286 = vunpack.c.l.bf16 %v99
    %v287 = vunpack.c.h.bf16 %v99
    %v288 = vunpack.c.l.bf16 %v100
    %v289 = vunpack.c.h.bf16 %v100
    %v290 = vunpack.c.l.bf16 %v101
    %v291 = vunpack.c.h.bf16 %v101
    %v292 = vunpack.c.l.bf16 %v102
    %v293 = vunpack.c.h.bf16 %v102
    %v294 = vunpack.c.l.bf16 %v103
    %v295 = vunpack.c.h.bf16 %v103
    %v296 = vunpack.c.l.bf16 %v104
    %v297 = vunpack.c.h.bf16 %v104
    %v298 = vunpack.c.l.bf16 %v105
    %v299 = vunpack.c.h.bf16 %v105
    %v300 = vunpack.c.l.bf16 %v106
    %v301 = vunpack.c.h.bf16 %v106
    %v302 = vunpack.c.l.bf16 %v107
    %v303 = vunpack.c.h.bf16 %v107
    %v304 = vunpack.c.l.bf16 %v108
    %v305 = vunpack.c.h.bf16 %v108
    %v306 = vunpack.c.l.bf16 %v109
    %v307 = vunpack.c.h.bf16 %v109
    %v308 = vunpack.c.l.bf16 %v110
    %v309 = vunpack.c.h.bf16 %v110
    %v310 = vunpack.c.l.bf16 %v111
    %v311 = vunpack.c.h.bf16 %v111
    %v312 = vunpack.c.l.bf16 %v112
    %v313 = vunpack.c.h.bf16 %v112
    %v314 = vunpack.c.l.bf16 %v113
    %v315 = vunpack.c.h.bf16 %v113
    %v316 = vunpack.c.l.bf16 %v114
    %v317 = vunpack.c.h.bf16 %v114
    %v318 = vunpack.c.l.bf16 %v115
    %v319 = vunpack.c.h.bf16 %v115
    %v320 = vunpack.c.l.bf16 %v116
    %v321 = vunpack.c.h.bf16 %v116
    %v322 = vunpack.c.l.bf16 %v117
    %v323 = vunpack.c.h.bf16 %v117
    %v324 = vunpack.c.l.bf16 %v118
    %v325 = vunpack.c.h.bf16 %v118
    %v326 = vunpack.c.l.bf16 %v119
    %v327 = vunpack.c.h.bf16 %v119
    %v328 = vunpack.c.l.bf16 %v120
    %v329 = vunpack.c.h.bf16 %v120
    %v330 = vunpack.c.l.bf16 %v121
    %v331 = vunpack.c.h.bf16 %v121
    %v332 = vunpack.c.l.bf16 %v122
    %v333 = vunpack.c.h.bf16 %v122
    %v334 = vunpack.c.l.bf16 %v123
    %v335 = vunpack.c.h.bf16 %v123
    %v336 = vunpack.c.l.bf16 %v124
    %v337 = vunpack.c.h.bf16 %v124
    %v338 = vunpack.c.l.bf16 %v125
    %v339 = vunpack.c.h.bf16 %v125
    %v340 = vunpack.c.l.bf16 %v126
    %v341 = vunpack.c.h.bf16 %v126
    %v342 = vunpack.c.l.bf16 %v127
    %v343 = vunpack.c.h.bf16 %v127
    %v344 = vunpack.c.l.bf16 %v128
    %v345 = vunpack.c.h.bf16 %v128
    %v346 = vunpack.c.l.bf16 %v129
    %v347 = vunpack.c.h.bf16 %v129
    %v348 = vunpack.c.l.bf16 %v130
    %v349 = vunpack.c.h.bf16 %v130
    %v350 = vunpack.c.l.bf16 %v131
    %v351 = vunpack.c.h.bf16 %v131
    %v352 = vunpack.c.l.bf16 %v132
    %v353 = vunpack.c.h.bf16 %v132
    %v354 = vunpack.c.l.bf16 %v133
    %v355 = vunpack.c.h.bf16 %v133
    %v356 = vunpack.c.l.bf16 %v134
    %v357 = vunpack.c.h.bf16 %v134
    %v358 = vunpack.c.l.bf16 %v135
    %v359 = vunpack.c.h.bf16 %v135
    %v360 = vunpack.c.l.bf16 %v136
    %v361 = vunpack.c.h.bf16 %v136
    %v362 = vunpack.c.l.bf16 %v137
    %v363 = vunpack.c.h.bf16 %v137
    %v364 = vunpack.c.l.bf16 %v138
    %v365 = vunpack.c.h.bf16 %v138
    %v366 = vunpack.c.l.bf16 %v139
    %v367 = vunpack.c.h.bf16 %v139
    %v368 = vunpack.c.l.bf16 %v140
    %v369 = vunpack.c.h.bf16 %v140
    %v370 = vunpack.c.l.bf16 %v141
    %v371 = vunpack.c.h.bf16 %v141
    %v372 = vunpack.c.l.bf16 %v142
    %v373 = vunpack.c.h.bf16 %v142
    %v374 = vunpack.c.l.bf16 %v143
    %v375 = vunpack.c.h.bf16 %v143
    %v376 = vunpack.c.l.bf16 %v144
    %v377 = vunpack.c.h.bf16 %v144
    %v378 = vunpack.c.l.bf16 %v145
    %v379 = vunpack.c.h.bf16 %v145
    %v380 = vunpack.c.l.bf16 %v146
    %v381 = vunpack.c.h.bf16 %v146
    %v382 = vunpack.c.l.bf16 %v147
    %v383 = vunpack.c.h.bf16 %v147
    %v384 = vunpack.c.l.bf16 %v148
    %v385 = vunpack.c.h.bf16 %v148
    %v386 = vunpack.c.l.bf16 %v149
    %v387 = vunpack.c.h.bf16 %v149
    %v388 = vunpack.c.l.bf16 %v150
    %v389 = vunpack.c.h.bf16 %v150
    %v390 = vunpack.c.l.bf16 %v151
    %v391 = vunpack.c.h.bf16 %v151
    %v392 = vunpack.c.l.bf16 %v152
    %v393 = vunpack.c.h.bf16 %v152
    %v394 = vunpack.c.l.bf16 %v153
    %v395 = vunpack.c.h.bf16 %v153
    %v396 = vunpack.c.l.bf16 %v154
    %v397 = vunpack.c.h.bf16 %v154
    %v398 = vunpack.c.l.bf16 %v155
    %v399 = vunpack.c.h.bf16 %v155
    %v400 = vunpack.c.l.bf16 %v156
    %v401 = vunpack.c.h.bf16 %v156
    %v402 = vunpack.c.l.bf16 %v157
    %v403 = vunpack.c.h.bf16 %v157
    %v404 = vunpack.c.l.bf16 %v158
    %v405 = vunpack.c.h.bf16 %v158
    %v406 = vunpack.c.l.bf16 %v159
    %v407 = vunpack.c.h.bf16 %v159
    %v408 = vunpack.c.l.bf16 %v160
    %v409 = vunpack.c.h.bf16 %v160
    %v410 = vunpack.c.l.bf16 %v161
    %v411 = vunpack.c.h.bf16 %v161
    %v412 = vunpack.c.l.bf16 %v162
    %v413 = vunpack.c.h.bf16 %v162
    %v414 = vunpack.c.l.bf16 %v163
    %v415 = vunpack.c.h.bf16 %v163
    %v416 = vunpack.c.l.bf16 %v164
    %v417 = vunpack.c.h.bf16 %v164
    %v418 = vunpack.c.l.bf16 %v165
    %v419 = vunpack.c.h.bf16 %v165
    %v420 = vunpack.c.l.bf16 %v166
    %v421 = vunpack.c.h.bf16 %v166
    %v422 = vunpack.c.l.bf16 %v167
    %v423 = vunpack.c.h.bf16 %v167
    %424 = vmatprep.subr.mxu0 %v169
    %425 = vmatpush1.msra.mxu0 %v168
    %426 = vmatprep.subr.mxu0 %v177
    %427 = vmatpush1.msra.mxu0 %v176
    %428 = vmatprep.subr.mxu0 %v185
    %429 = vmatpush1.msra.mxu0 %v184
    %430 = vmatprep.subr.mxu0 %v193
    %431 = vmatpush1.msra.mxu0 %v192
    %432 = vmatprep.subr.mxu0 %v201
    %433 = vmatpush1.msra.mxu0 %v200
    %434 = vmatprep.subr.mxu0 %v209
    %435 = vmatpush1.msra.mxu0 %v208
    %436 = vmatprep.subr.mxu0 %v217
    %437 = vmatpush1.msra.mxu0 %v216
    %438 = vmatprep.subr.mxu0 %v225
    %439 = vmatpush1.msra.mxu0 %v224
    %440 = vmatprep.subr.mxu0 %v233
    %441 = vmatpush1.msra.mxu0 %v232
    %442 = vmatprep.subr.mxu0 %v241
    %443 = vmatpush1.msra.mxu0 %v240
    %444 = vmatprep.subr.mxu0 %v249
    %445 = vmatpush1.msra.mxu0 %v248
    %446 = vmatprep.subr.mxu0 %v257
    %447 = vmatpush1.msra.mxu0 %v256
    %448 = vmatprep.subr.mxu0 %v265
    %449 = vmatpush1.msra.mxu0 %v264
    %450 = vmatprep.subr.mxu0 %v273
    %451 = vmatpush1.msra.mxu0 %v272
    %452 = vmatprep.subr.mxu0 %v281
    %453 = vmatpush1.msra.mxu0 %v280
    %454 = vmatprep.subr.mxu0 %v289
    %455 = vmatpush1.msra.mxu0 %v288
    %456 = vmatprep.subr.mxu0 %v297
    %457 = vmatpush1.msra.mxu0 %v296
    %458 = vmatprep.subr.mxu0 %v305
    %459 = vmatpush1.msra.mxu0 %v304
    %460 = vmatprep.subr.mxu0 %v313
    %461 = vmatpush1.msra.mxu0 %v312
    %462 = vmatprep.subr.mxu0 %v321
    %463 = vmatpush1.msra.mxu0 %v320
    %464 = vmatprep.subr.mxu0 %v329
    %465 = vmatpush1.msra.mxu0 %v328
    %466 = vmatprep.subr.mxu0 %v337
    %467 = vmatpush1.msra.mxu0 %v336
    %468 = vmatprep.subr.mxu0 %v345
    %469 = vmatpush1.msra.mxu0 %v344
    %470 = vmatprep.subr.mxu0 %v353
    %471 = vmatpush1.msra.mxu0 %v352
    %472 = vmatprep.subr.mxu0 %v361
    %473 = vmatpush1.msra.mxu0 %v360
    %474 = vmatprep.subr.mxu0 %v369
    %475 = vmatpush1.msra.mxu0 %v368
    %476 = vmatprep.subr.mxu0 %v377
    %477 = vmatpush1.msra.mxu0 %v376
    %478 = vmatprep.subr.mxu0 %v385
    %479 = vmatpush1.msra.mxu0 %v384
    %480 = vmatprep.subr.mxu0 %v393
    %481 = vmatpush1.msra.mxu0 %v392
    %482 = vmatprep.subr.mxu0 %v401
    %483 = vmatpush1.msra.mxu0 %v400
    %484 = vmatprep.subr.mxu0 %v409
    %485 = vmatpush1.msra.mxu0 %v408
    %486 = vmatprep.subr.mxu0 %v417
    %487 = vmatpush1.msra.mxu0 %v416
    %488 = vmatprep.mubr.f32.mxu0 %v39
    %489 = vmatmul.mubr.f32.gmra.mrb[0].mxu0 %v38
    %v490 = vpop.f32.mrb[0].mxu0
    %v491 = vadd.f32 0.0, %v490
    %v492 = vpop.f32.mrb[0].mxu0
    %v493 = vadd.f32 0.0, %v492
    %494 = vdwg.mxu0
    %495 = vmatprep.subr.mxu0 %v171
    %496 = vmatpush1.msra.mxu0 %v170
    %497 = vmatprep.subr.mxu0 %v179
    %498 = vmatpush1.msra.mxu0 %v178
    %499 = vmatprep.subr.mxu0 %v187
    %500 = vmatpush1.msra.mxu0 %v186
    %501 = vmatprep.subr.mxu0 %v195
    %502 = vmatpush1.msra.mxu0 %v194
    %503 = vmatprep.subr.mxu0 %v203
    %504 = vmatpush1.msra.mxu0 %v202
    %505 = vmatprep.subr.mxu0 %v211
    %506 = vmatpush1.msra.mxu0 %v210
    %507 = vmatprep.subr.mxu0 %v219
    %508 = vmatpush1.msra.mxu0 %v218
    %509 = vmatprep.subr.mxu0 %v227
    %510 = vmatpush1.msra.mxu0 %v226
    %511 = vmatprep.subr.mxu0 %v235
    %512 = vmatpush1.msra.mxu0 %v234
    %513 = vmatprep.subr.mxu0 %v243
    %514 = vmatpush1.msra.mxu0 %v242
    %515 = vmatprep.subr.mxu0 %v251
    %516 = vmatpush1.msra.mxu0 %v250
    %517 = vmatprep.subr.mxu0 %v259
    %518 = vmatpush1.msra.mxu0 %v258
    %519 = vmatprep.subr.mxu0 %v267
    %520 = vmatpush1.msra.mxu0 %v266
    %521 = vmatprep.subr.mxu0 %v275
    %522 = vmatpush1.msra.mxu0 %v274
    %523 = vmatprep.subr.mxu0 %v283
    %524 = vmatpush1.msra.mxu0 %v282
    %525 = vmatprep.subr.mxu0 %v291
    %526 = vmatpush1.msra.mxu0 %v290
    %527 = vmatprep.subr.mxu0 %v299
    %528 = vmatpush1.msra.mxu0 %v298
    %529 = vmatprep.subr.mxu0 %v307
    %530 = vmatpush1.msra.mxu0 %v306
    %531 = vmatprep.subr.mxu0 %v315
    %532 = vmatpush1.msra.mxu0 %v314
    %533 = vmatprep.subr.mxu0 %v323
    %534 = vmatpush1.msra.mxu0 %v322
    %535 = vmatprep.subr.mxu0 %v331
    %536 = vmatpush1.msra.mxu0 %v330
    %537 = vmatprep.subr.mxu0 %v339
    %538 = vmatpush1.msra.mxu0 %v338
    %539 = vmatprep.subr.mxu0 %v347
    %540 = vmatpush1.msra.mxu0 %v346
    %541 = vmatprep.subr.mxu0 %v355
    %542 = vmatpush1.msra.mxu0 %v354
    %543 = vmatprep.subr.mxu0 %v363
    %544 = vmatpush1.msra.mxu0 %v362
    %545 = vmatprep.subr.mxu0 %v371
    %546 = vmatpush1.msra.mxu0 %v370
    %547 = vmatprep.subr.mxu0 %v379
    %548 = vmatpush1.msra.mxu0 %v378
    %549 = vmatprep.subr.mxu0 %v387
    %550 = vmatpush1.msra.mxu0 %v386
    %551 = vmatprep.subr.mxu0 %v395
    %552 = vmatpush1.msra.mxu0 %v394
    %553 = vmatprep.subr.mxu0 %v403
    %554 = vmatpush1.msra.mxu0 %v402
    %555 = vmatprep.subr.mxu0 %v411
    %556 = vmatpush1.msra.mxu0 %v410
    %557 = vmatprep.subr.mxu0 %v419
    %558 = vmatpush1.msra.mxu0 %v418
    %559 = vmatprep.mubr.f32.mxu0 %v39
    %560 = vmatmul.mubr.f32.gmra.mrb[0].mxu0 %v38
    %v561 = vpop.f32.mrb[0].mxu0
    %v562 = vadd.f32 0.0, %v561
    %v563 = vpop.f32.mrb[0].mxu0
    %v564 = vadd.f32 0.0, %v563
    %565 = vdwg.mxu0
    %566 = vmatprep.subr.mxu0 %v173
    %567 = vmatpush1.msra.mxu0 %v172
    %568 = vmatprep.subr.mxu0 %v181
    %569 = vmatpush1.msra.mxu0 %v180
    %570 = vmatprep.subr.mxu0 %v189
    %571 = vmatpush1.msra.mxu0 %v188
    %572 = vmatprep.subr.mxu0 %v197
    %573 = vmatpush1.msra.mxu0 %v196
    %574 = vmatprep.subr.mxu0 %v205
    %575 = vmatpush1.msra.mxu0 %v204
    %576 = vmatprep.subr.mxu0 %v213
    %577 = vmatpush1.msra.mxu0 %v212
    %578 = vmatprep.subr.mxu0 %v221
    %579 = vmatpush1.msra.mxu0 %v220
    %580 = vmatprep.subr.mxu0 %v229
    %581 = vmatpush1.msra.mxu0 %v228
    %582 = vmatprep.subr.mxu0 %v237
    %583 = vmatpush1.msra.mxu0 %v236
    %584 = vmatprep.subr.mxu0 %v245
    %585 = vmatpush1.msra.mxu0 %v244
    %586 = vmatprep.subr.mxu0 %v253
    %587 = vmatpush1.msra.mxu0 %v252
    %588 = vmatprep.subr.mxu0 %v261
    %589 = vmatpush1.msra.mxu0 %v260
    %590 = vmatprep.subr.mxu0 %v269
    %591 = vmatpush1.msra.mxu0 %v268
    %592 = vmatprep.subr.mxu0 %v277
    %593 = vmatpush1.msra.mxu0 %v276
    %594 = vmatprep.subr.mxu0 %v285
    %595 = vmatpush1.msra.mxu0 %v284
    %596 = vmatprep.subr.mxu0 %v293
    %597 = vmatpush1.msra.mxu0 %v292
    %598 = vmatprep.subr.mxu0 %v301
    %599 = vmatpush1.msra.mxu0 %v300
    %600 = vmatprep.subr.mxu0 %v309
    %601 = vmatpush1.msra.mxu0 %v308
    %602 = vmatprep.subr.mxu0 %v317
    %603 = vmatpush1.msra.mxu0 %v316
    %604 = vmatprep.subr.mxu0 %v325
    %605 = vmatpush1.msra.mxu0 %v324
    %606 = vmatprep.subr.mxu0 %v333
    %607 = vmatpush1.msra.mxu0 %v332
    %608 = vmatprep.subr.mxu0 %v341
    %609 = vmatpush1.msra.mxu0 %v340
    %610 = vmatprep.subr.mxu0 %v349
    %611 = vmatpush1.msra.mxu0 %v348
    %612 = vmatprep.subr.mxu0 %v357
    %613 = vmatpush1.msra.mxu0 %v356
    %614 = vmatprep.subr.mxu0 %v365
    %615 = vmatpush1.msra.mxu0 %v364
    %616 = vmatprep.subr.mxu0 %v373
    %617 = vmatpush1.msra.mxu0 %v372
    %618 = vmatprep.subr.mxu0 %v381
    %619 = vmatpush1.msra.mxu0 %v380
    %620 = vmatprep.subr.mxu0 %v389
    %621 = vmatpush1.msra.mxu0 %v388
    %622 = vmatprep.subr.mxu0 %v397
    %623 = vmatpush1.msra.mxu0 %v396
    %624 = vmatprep.subr.mxu0 %v405
    %625 = vmatpush1.msra.mxu0 %v404
    %626 = vmatprep.subr.mxu0 %v413
    %627 = vmatpush1.msra.mxu0 %v412
    %628 = vmatprep.subr.mxu0 %v421
    %629 = vmatpush1.msra.mxu0 %v420
    %630 = vmatprep.mubr.f32.mxu0 %v39
    %631 = vmatmul.mubr.f32.gmra.mrb[0].mxu0 %v38
    %v632 = vpop.f32.mrb[0].mxu0
    %v633 = vadd.f32 0.0, %v632
    %v634 = vpop.f32.mrb[0].mxu0
    %v635 = vadd.f32 0.0, %v634
    %636 = vdwg.mxu0
    %637 = vmatprep.subr.mxu0 %v175
    %638 = vmatpush1.msra.mxu0 %v174
    %639 = vmatprep.subr.mxu0 %v183
    %640 = vmatpush1.msra.mxu0 %v182
    %641 = vmatprep.subr.mxu0 %v191
    %642 = vmatpush1.msra.mxu0 %v190
    %643 = vmatprep.subr.mxu0 %v199
    %644 = vmatpush1.msra.mxu0 %v198
    %645 = vmatprep.subr.mxu0 %v207
    %646 = vmatpush1.msra.mxu0 %v206
    %647 = vmatprep.subr.mxu0 %v215
    %648 = vmatpush1.msra.mxu0 %v214
    %649 = vmatprep.subr.mxu0 %v223
    %650 = vmatpush1.msra.mxu0 %v222
    %651 = vmatprep.subr.mxu0 %v231
    %652 = vmatpush1.msra.mxu0 %v230
    %653 = vmatprep.subr.mxu0 %v239
    %654 = vmatpush1.msra.mxu0 %v238
    %655 = vmatprep.subr.mxu0 %v247
    %656 = vmatpush1.msra.mxu0 %v246
    %657 = vmatprep.subr.mxu0 %v255
    %658 = vmatpush1.msra.mxu0 %v254
    %659 = vmatprep.subr.mxu0 %v263
    %660 = vmatpush1.msra.mxu0 %v262
    %661 = vmatprep.subr.mxu0 %v271
    %662 = vmatpush1.msra.mxu0 %v270
    %663 = vmatprep.subr.mxu0 %v279
    %664 = vmatpush1.msra.mxu0 %v278
    %665 = vmatprep.subr.mxu0 %v287
    %666 = vmatpush1.msra.mxu0 %v286
    %667 = vmatprep.subr.mxu0 %v295
    %668 = vmatpush1.msra.mxu0 %v294
    %669 = vmatprep.subr.mxu0 %v303
    %670 = vmatpush1.msra.mxu0 %v302
    %671 = vmatprep.subr.mxu0 %v311
    %672 = vmatpush1.msra.mxu0 %v310
    %673 = vmatprep.subr.mxu0 %v319
    %674 = vmatpush1.msra.mxu0 %v318
    %675 = vmatprep.subr.mxu0 %v327
    %676 = vmatpush1.msra.mxu0 %v326
    %677 = vmatprep.subr.mxu0 %v335
    %678 = vmatpush1.msra.mxu0 %v334
    %679 = vmatprep.subr.mxu0 %v343
    %680 = vmatpush1.msra.mxu0 %v342
    %681 = vmatprep.subr.mxu0 %v351
    %682 = vmatpush1.msra.mxu0 %v350
    %683 = vmatprep.subr.mxu0 %v359
    %684 = vmatpush1.msra.mxu0 %v358
    %685 = vmatprep.subr.mxu0 %v367
    %686 = vmatpush1.msra.mxu0 %v366
    %687 = vmatprep.subr.mxu0 %v375
    %688 = vmatpush1.msra.mxu0 %v374
    %689 = vmatprep.subr.mxu0 %v383
    %690 = vmatpush1.msra.mxu0 %v382
    %691 = vmatprep.subr.mxu0 %v391
    %692 = vmatpush1.msra.mxu0 %v390
    %693 = vmatprep.subr.mxu0 %v399
    %694 = vmatpush1.msra.mxu0 %v398
    %695 = vmatprep.subr.mxu0 %v407
    %696 = vmatpush1.msra.mxu0 %v406
    %697 = vmatprep.subr.mxu0 %v415
    %698 = vmatpush1.msra.mxu0 %v414
    %699 = vmatprep.subr.mxu0 %v423
    %700 = vmatpush1.msra.mxu0 %v422
    %701 = vmatprep.mubr.f32.mxu0 %v39
    %702 = vmatmul.mubr.f32.gmra.mrb[0].mxu0 %v38
    %v703 = vpop.f32.mrb[0].mxu0
    %v704 = vadd.f32 0.0, %v703
    %v705 = vpop.f32.mrb[0].mxu0
    %v706 = vadd.f32 0.0, %v705
    %707 = vdwg.mxu0
    %708 = vst [vmem:[#allocation7] sm:$0xff] %v491
    %709 = vst [vmem:[#allocation7 + $0x8] sm:$0xff] %v493
    %710 = vst [vmem:[#allocation7 + $0x10] sm:$0xff] %v562
    %711 = vst [vmem:[#allocation7 + $0x18] sm:$0xff] %v564
    %712 = vst [vmem:[#allocation7 + $0x20] sm:$0xff] %v633
    %713 = vst [vmem:[#allocation7 + $0x28] sm:$0xff] %v635
    %714 = vst [vmem:[#allocation7 + $0x30] sm:$0xff] %v704
    %715 = vst [vmem:[#allocation7 + $0x38] sm:$0xff] %v706
    // Predicated region
    $region18: #{tpu_custom_call.1} parent=1 // pred_check
      _
    $region19: #{tpu_custom_call.1} parent=1 // pred_check_branch
      %717 = sbr.rel (0) target = $region21
    $region20: #{tpu_custom_call.1} parent=1 // pred_region
      %s719 = ssub.s32 1024, 1024
      %720 = vsyncadd [#allocation4], %s719
      %s722 = sshll.u32 [#allocation7], 4
      %s723 = int_to_ptr.vmem [resolvable:$true] %s722
      %725 = dma.vmem_to_hbm [thread:$0]  %s723, 1024, %s2, [#allocation4]
    $region21: #{tpu_custom_call.1} parent=1 // pred_fallthru
      _
    // Predicated region
    $region22: #{tpu_custom_call.1} parent=1 // pred_check
      _
    $region23: #{tpu_custom_call.1} parent=1 // pred_check_branch
      %727 = sbr.rel (0) target = $region25
    $region24: #{tpu_custom_call.1} parent=1 // pred_region
      %728 = dma.done [#allocation4], 1024
    $region25: #{tpu_custom_call.1} parent=1 // pred_fallthru
      _
    %729 = vsyncpa [#allocation3], 1
    %730 = vsyncpa [#allocation6], 1
    %731 = vsyncpa [#allocation4], 1

</llo_original>
